<compile_context>
chip_gen: v5e
topology: v5e:2x2
jax: 0.10.0
libtpu: 0.0.40
codegen_flags: <defaults>
</compile_context>

<pallas_src>
import math

import jax
import jax.numpy as jnp
from jax.experimental import pallas as pl
from jax.experimental.pallas import tpu as pltpu

# Full-precision f32 matmuls (applies to the dots traced inside the kernels
# as well, via the precision attribute on dot_general).
jax.config.update("jax_default_matmul_precision", "highest")


# ----------------------------------------------------------------------------
# Pallas kernels
# ----------------------------------------------------------------------------
def _rwse_kernel(x_ref, rwse_ref, wx_ref, wpe_ref, b_ref, out_ref):
    """SE branch with eval-BN + concat folded into padded weights:
       out = x @ Wx_pad + rwse @ Wpe_pad + b_cat   (single [tile, dim_emb] store)."""
    acc = jnp.dot(x_ref[...], wx_ref[...], preferred_element_type=jnp.float32)
    acc = acc + jnp.dot(rwse_ref[...], wpe_ref[...],
                        preferred_element_type=jnp.float32)
    out_ref[...] = (acc + b_ref[...]).astype(out_ref.dtype)


def _lappe_kernel(x_ref, eig_ref, wx_ref, bx_ref, r01_ref, rmask_ref, ba_ref,
                  s_ref, out_ref):
    """PE branch (DeepSet, 1 ReLU layer), vectorized over frequencies via matmuls.

    eig_ref : [tile, 2F]  (columns 0..F-1 = eigvecs, F..2F-1 = eigvals)
    r01     : [2F, F*dim_pe] replication matrix pre-scaled by WA[0]/WA[1]
    rmask   : [2F, F*dim_pe] binary replication matrix (eigvec-NaN mask expansion)
    ba      : [1, F*dim_pe]  tiled bias
    s       : [F*dim_pe, dim_emb] sum-over-frequencies + place-into-pe-columns
    """
    f32 = jnp.float32
    h = jnp.dot(x_ref[...], wx_ref[...], preferred_element_type=f32) + bx_ref[...]

    eig = eig_ref[...]                               # [tile, 2F]
    nan = eig != eig                                 # NaN test
    clean = jnp.where(nan, 0.0, eig)
    notnan = jnp.where(nan, 0.0, 1.0).astype(f32)

    z = jnp.dot(clean, r01_ref[...], preferred_element_type=f32) + ba_ref[...]
    z = jnp.maximum(z, 0.0)                          # [tile, F*dim_pe]
    z = z * jnp.dot(notnan, rmask_ref[...], preferred_element_type=f32)
    pe = jnp.dot(z, s_ref[...], preferred_element_type=f32)   # [tile, dim_emb]

    out_ref[...] = (h + pe).astype(out_ref.dtype)


# ----------------------------------------------------------------------------
# pallas_call wrappers
# ----------------------------------------------------------------------------
def _round_up(v, m):
    return (v + m - 1) // m * m


def _pick_tile(n, tile_n):
    """Node-tile size: large (amortizes the ~600-cycle grid-step overhead),
    multiple of 8 (sublane), and <= ceil(n/2) when the graph is big enough so
    the single 'parallel' grid axis has >= 2 steps (both TCs on v7x)."""
    n8 = _round_up(max(n, 1), 8)
    if n8 <= 16:
        return n8
    return max(8, min(tile_n, _round_up(pl.cdiv(n8, 2), 8)))


def _pad_rows(a, n_pad):
    n = a.shape[0]
    if n == n_pad:
        return a
    return jnp.pad(a, ((0, n_pad - n),) + ((0, 0),) * (a.ndim - 1))


def _rep_spec(shape):
    nd = len(shape)
    return pl.BlockSpec(shape, lambda i, _nd=nd: (0,) * _nd)


def rwse_forward(x, rwse, wx_pad, wpe_pad, b_cat, *, tile_n=1024):
    n, dim_in = x.shape
    k = rwse.shape[1]
    dim_emb = wx_pad.shape[1]
    tile = _pick_tile(n, tile_n)
    n_pad = _round_up(n, tile)
    xp = _pad_rows(x, n_pad)
    rp = _pad_rows(rwse, n_pad)
    out = pl.pallas_call(
        _rwse_kernel,
        out_shape=jax.ShapeDtypeStruct((n_pad, dim_emb), x.dtype),
        grid=(n_pad // tile,),
        in_specs=[
            pl.BlockSpec((tile, dim_in), lambda i: (i, 0)),
            pl.BlockSpec((tile, k), lambda i: (i, 0)),
            _rep_spec((dim_in, dim_emb)),
            _rep_spec((k, dim_emb)),
            _rep_spec((1, dim_emb)),
        ],
        out_specs=pl.BlockSpec((tile, dim_emb), lambda i: (i, 0)),
        compiler_params=pltpu.CompilerParams(
            dimension_semantics=("parallel",)),
    )(xp, rp, wx_pad, wpe_pad, b_cat)
    return out[:n] if n_pad != n else out


def lappe_forward(x, eig_cat, wx_pad, bx_pad, r01, rmask, ba_t, s_sum,
                  *, tile_n=1024):
    n, dim_in = x.shape
    two_f = eig_cat.shape[1]
    fp = r01.shape[1]
    dim_emb = wx_pad.shape[1]
    tile = _pick_tile(n, tile_n)
    n_pad = _round_up(n, tile)
    xp = _pad_rows(x, n_pad)
    ep = _pad_rows(eig_cat, n_pad)
    out = pl.pallas_call(
        _lappe_kernel,
        out_shape=jax.ShapeDtypeStruct((n_pad, dim_emb), x.dtype),
        grid=(n_pad // tile,),
        in_specs=[
            pl.BlockSpec((tile, dim_in), lambda i: (i, 0)),
            pl.BlockSpec((tile, two_f), lambda i: (i, 0)),
            _rep_spec((dim_in, dim_emb)),
            _rep_spec((1, dim_emb)),
            _rep_spec((two_f, fp)),
            _rep_spec((two_f, fp)),
            _rep_spec((1, fp)),
            _rep_spec((fp, dim_emb)),
        ],
        out_specs=pl.BlockSpec((tile, dim_emb), lambda i: (i, 0)),
        compiler_params=pltpu.CompilerParams(
            dimension_semantics=("parallel",)),
    )(xp, ep, wx_pad, bx_pad, r01, rmask, ba_t, s_sum)
    return out[:n] if n_pad != n else out


# ----------------------------------------------------------------------------
# GenericNodeEncoder (host-side bandit state + deterministic parameters)
# ----------------------------------------------------------------------------
def _uniform(key, shape, fan_in):
    bound = 1.0 / math.sqrt(fan_in)
    return jax.random.uniform(key, shape, jnp.float32, -bound, bound)


class GenericNodeEncoderPallas:
    def __init__(self, dim_in, dim_emb, dim_pe, num_rw_steps, max_freqs,
                 expand_x=True, key=jax.random.PRNGKey(0)):
        assert expand_x, "only expand_x=True (the default) is implemented"
        # TODO(synk): expand_x=False path (h = raw x) not wired into the kernels.
        dim_h = dim_emb - dim_pe
        ks = jax.random.split(key, 10)

        # shared node-feature expansion: Linear(dim_in, dim_emb - dim_pe)
        self.wx = _uniform(ks[0], (dim_in, dim_h), dim_in)
        self.bx = _uniform(ks[1], (1, dim_h), dim_in)

        # RWSE encoder: eval-mode BatchNorm1d(num_rw_steps) -> scale/shift,
        # then Linear(num_rw_steps, dim_pe)
        gamma = 1.0 + 0.1 * jax.random.normal(ks[2], (1, num_rw_steps), jnp.float32)
        beta = 0.1 * jax.random.normal(ks[3], (1, num_rw_steps), jnp.float32)
        run_mean = 0.1 * jax.random.normal(ks[4], (1, num_rw_steps), jnp.float32)
        run_var = jnp.abs(1.0 + 0.1 * jax.random.normal(ks[5], (1, num_rw_steps),
                                                        jnp.float32))
        inv_std = 1.0 / jnp.sqrt(run_var + 1e-5)
        self.bn_scale = gamma * inv_std
        self.bn_shift = beta - gamma * run_mean * inv_std
        self.wpe = _uniform(ks[6], (num_rw_steps, dim_pe), num_rw_steps)
        self.bpe = _uniform(ks[7], (1, dim_pe), num_rw_steps)

        # LapPE encoder: linear_A = Linear(2, dim_pe), DeepSet with 1 ReLU layer
        self.wa = _uniform(ks[8], (2, dim_pe), 2)
        self.ba = _uniform(ks[9], (1, dim_pe), 2)

        # ---- fused / padded parameters for the kernels (math-identical) ----
        # RWSE: fold eval-BN into the PE linear; fuse the concat by zero-padding
        # both weight matrices into the full dim_emb column space.
        wpe_eff = self.bn_scale.reshape(-1, 1) * self.wpe           # [k, dim_pe]
        bpe_eff = self.bn_shift @ self.wpe + self.bpe               # [1, dim_pe]
        self.wx_pad = jnp.pad(self.wx, ((0, 0), (0, dim_pe)))       # [in, emb]
        self.wpe_pad = jnp.pad(wpe_eff, ((0, 0), (dim_h, 0)))       # [k, emb]
        self.b_rwse = jnp.concatenate([self.bx, bpe_eff], axis=1)   # [1, emb]

        # LapPE: fuse concat into padded x-bias; express the per-frequency
        # DeepSet layer as matmuls on a single [N, 2F] input:
        # replicate-per-freq -> relu -> mask -> sum/place.
        self.bx_pad = jnp.pad(self.bx, ((0, 0), (0, dim_pe)))       # [1, emb]
        fp = max_freqs * dim_pe
        rows = jnp.repeat(jnp.arange(max_freqs), dim_pe)
        cols = jnp.arange(fp)
        rep = jnp.zeros((max_freqs, fp), jnp.float32).at[rows, cols].set(1.0)
        r0 = rep * jnp.tile(self.wa[0], max_freqs)[None, :]
        r1 = rep * jnp.tile(self.wa[1], max_freqs)[None, :]
        self.lap_r01 = jnp.concatenate([r0, r1], axis=0)            # [2F, F*pe]
        self.lap_rmask = jnp.concatenate([rep, jnp.zeros_like(rep)], axis=0)
        self.lap_ba = jnp.tile(self.ba, (1, max_freqs))             # [1, F*pe]
        self.lap_s = jnp.zeros((fp, dim_emb), jnp.float32).at[
            cols, dim_h + (cols % dim_pe)].set(1.0)                 # [F*pe, emb]

        # host-side bandit state (as in the torch module)
        self.cum_loss_pe = 0.0
        self.cum_loss_se = 0.0
        self.last_action = 1
        self.steps = 0
        self.num_restarts = 0

    def record_loss(self, loss):
        if self.last_action == 0:
            self.cum_loss_pe += 0.1 * (loss - self.cum_loss_pe)
        else:
            self.cum_loss_se += 0.1 * (loss - self.cum_loss_se)

    def _se_forward(self, batch):
        return rwse_forward(batch["x"], batch["pestat_RWSE"],
                            self.wx_pad, self.wpe_pad, self.b_rwse)

    def _pe_forward(self, batch):
        eig = batch.get("EigCat")
        if eig is None:   # concatenate once (preferably at batch-prep time)
            eig = jnp.concatenate([batch["EigVecs"], batch["EigVals"]], axis=1)
        return lappe_forward(batch["x"], eig, self.wx_pad, self.bx_pad,
                             self.lap_r01, self.lap_rmask, self.lap_ba,
                             self.lap_s)

    def forward(self, batch):
        if self.steps >= 2 ** (self.num_restarts + 5):
            self.num_restarts += 1
            # TODO(synk): torch.rand epsilon-greedy flip (which references a
            # nonexistent self.action in the original code) kept as greedy pick.
            if self.cum_loss_pe < self.cum_loss_se:
                self.last_action = 0
            else:
                self.last_action = 1
        if self.last_action == 0:
            out = self._pe_forward(batch)
        else:
            out = self._se_forward(batch)
        self.steps += 1
        return out


# ----------------------------------------------------------------------------
# demo / self-check
# ----------------------------------------------------------------------------
if __name__ == "__main__":
    # N deliberately not a multiple of 8 or of the tile size to exercise
    # cdiv / row padding.
    N, DIM_IN, DIM_EMB, DIM_PE, K_RWSE, MAX_FREQS = 300, 32, 32, 8, 8, 8

    root = jax.random.PRNGKey(0)
    k_x, k_rwse, k_vec, k_val, k_par = jax.random.split(root, 5)

    x = jax.random.normal(k_x, (N, DIM_IN), jnp.float32)
    rwse = jax.random.uniform(k_rwse, (N, K_RWSE), jnp.float32)
    eigvecs = jax.random.normal(k_vec, (N, MAX_FREQS), jnp.float32)
    eigvals = jnp.abs(jax.random.normal(k_val, (N, MAX_FREQS), jnp.float32))
    # pad the last two frequencies of the first half of nodes with NaN
    pad_mask = (jnp.arange(N)[:, None] < N // 2) & \
               (jnp.arange(MAX_FREQS)[None, :] >= 6)
    eigvecs = jnp.where(pad_mask, jnp.nan, eigvecs)
    eigvals = jnp.where(pad_mask, jnp.nan, eigvals)

    batch = {
        "x": x,
        "pestat_RWSE": rwse,
        "EigVecs": eigvecs,
        "EigVals": eigvals,
        # concatenated once at batch-prep time -> one eigen-input DMA per tile
        "EigCat": jnp.concatenate([eigvecs, eigvals], axis=1),
    }

    enc = GenericNodeEncoderPallas(DIM_IN, DIM_EMB, DIM_PE, K_RWSE, MAX_FREQS,
                                   expand_x=True, key=k_par)

    # default-state forward: runs the SE (RWSE) branch
    out_se = jax.block_until_ready(enc.forward(batch))

    # reference (pure JAX, matmul-free -> exact f32 VPU math) for the SE branch
    ref_h = (x[:, :, None] * enc.wx[None, :, :]).sum(axis=1) + enc.bx
    rw_n = rwse * enc.bn_scale + enc.bn_shift
    ref_pe_se = (rw_n[:, :, None] * enc.wpe[None, :, :]).sum(axis=1) + enc.bpe
    ref_se = jnp.concatenate([ref_h, ref_pe_se], axis=1)
    assert out_se.shape == (N, DIM_EMB)
    assert jnp.allclose(out_se, ref_se, atol=2e-2, rtol=2e-2)

    # also exercise the PE (LapPE) branch kernel and check it
    out_pe = jax.block_until_ready(enc._pe_forward(batch))
    vec_nan = jnp.isnan(eigvecs)
    vec_c = jnp.where(vec_nan, 0.0, eigvecs)
    val_c = jnp.where(jnp.isnan(eigvals), 0.0, eigvals)
    pe_ref = jnp.maximum(vec_c[..., None] * enc.wa[0][None, None, :]
                         + val_c[..., None] * enc.wa[1][None, None, :]
                         + enc.ba[0][None, None, :], 0.0)          # [N, F, pe]
    pe_ref = jnp.where(vec_nan[..., None], 0.0, pe_ref).sum(axis=1)
    ref_lap = jnp.concatenate([ref_h, pe_ref], axis=1)
    assert out_pe.shape == (N, DIM_EMB)
    assert jnp.allclose(out_pe, ref_lap, atol=2e-2, rtol=2e-2)

    print("KERNEL_OK")
</pallas_src>

<mosaic_0001>
module attributes {stable_mosaic.version = 11 : i64} {
  func.func @_rwse_kernel(%arg0: i32, %arg1: memref<152x32xf32, #tpu.memory_space<vmem>>, %arg2: memref<152x8xf32, #tpu.memory_space<vmem>>, %arg3: memref<32x32xf32, #tpu.memory_space<vmem>>, %arg4: memref<8x32xf32, #tpu.memory_space<vmem>>, %arg5: memref<1x32xf32, #tpu.memory_space<vmem>>, %arg6: memref<152x32xf32, #tpu.memory_space<vmem>>) attributes {dimension_semantics = [#tpu.dimension_semantics<parallel>], iteration_bounds = array<i64: 2>, scalar_prefetch = 0 : i64, scratch_operands = 0 : i64, tpu.core_type = #tpu.core_type<tc>, window_params = [{transform_indices = @transform_0, window_bounds = array<i64: 152, 32>}, {transform_indices = @transform_1, window_bounds = array<i64: 152, 8>}, {pipeline_mode = #tpu.pipeline_mode<synchronous>, transform_indices = @transform_2, window_bounds = array<i64: 32, 32>}, {pipeline_mode = #tpu.pipeline_mode<synchronous>, transform_indices = @transform_3, window_bounds = array<i64: 8, 32>}, {pipeline_mode = #tpu.pipeline_mode<synchronous>, transform_indices = @transform_4, window_bounds = array<i64: 1, 32>}, {transform_indices = @transform_5, window_bounds = array<i64: 152, 32>}]} {
    %c0 = arith.constant 0 : index
    %c0_0 = arith.constant 0 : index
    %0 = vector.load %arg1[%c0, %c0_0] : memref<152x32xf32, #tpu.memory_space<vmem>>, vector<152x32xf32>
    %c0_1 = arith.constant 0 : index
    %c0_2 = arith.constant 0 : index
    %1 = vector.load %arg3[%c0_1, %c0_2] : memref<32x32xf32, #tpu.memory_space<vmem>>, vector<32x32xf32>
    %cst = arith.constant dense<0.000000e+00> : vector<152x32xf32>
    %2 = tpu.matmul %0, %1, %cst {dimension_numbers = #tpu.dot_dimension_numbers<[1], [0], [0], [1], [0, 0, 1, 1], [], []>, precision = #tpu.contract_precision<fp32>} : vector<152x32xf32>, vector<32x32xf32>, vector<152x32xf32> -> vector<152x32xf32>
    %c0_3 = arith.constant 0 : index
    %c0_4 = arith.constant 0 : index
    %3 = vector.load %arg2[%c0_3, %c0_4] : memref<152x8xf32, #tpu.memory_space<vmem>>, vector<152x8xf32>
    %c0_5 = arith.constant 0 : index
    %c0_6 = arith.constant 0 : index
    %4 = vector.load %arg4[%c0_5, %c0_6] : memref<8x32xf32, #tpu.memory_space<vmem>>, vector<8x32xf32>
    %cst_7 = arith.constant dense<0.000000e+00> : vector<152x32xf32>
    %5 = tpu.matmul %3, %4, %cst_7 {dimension_numbers = #tpu.dot_dimension_numbers<[1], [0], [0], [1], [0, 0, 1, 1], [], []>, precision = #tpu.contract_precision<fp32>} : vector<152x8xf32>, vector<8x32xf32>, vector<152x32xf32> -> vector<152x32xf32>
    %6 = arith.addf %2, %5 : vector<152x32xf32>
    %c0_8 = arith.constant 0 : index
    %c0_9 = arith.constant 0 : index
    %7 = vector.load %arg5[%c0_8, %c0_9] : memref<1x32xf32, #tpu.memory_space<vmem>>, vector<1x32xf32>
    %8 = vector.broadcast %7 : vector<1x32xf32> to vector<152x32xf32>
    %9 = arith.addf %6, %8 : vector<152x32xf32>
    %c0_10 = arith.constant 0 : index
    %c0_11 = arith.constant 0 : index
    %10 = vector.load %arg6[%c0_10, %c0_11] : memref<152x32xf32, #tpu.memory_space<vmem>>, vector<152x32xf32>
    tpu.vector_store %arg6[%c0_10, %c0_11], %9 {strides = array<i32>} : memref<152x32xf32, #tpu.memory_space<vmem>>, vector<152x32xf32>,
    return
  }
  func.func @transform_0(%arg0: i32) -> (i32, i32) {
    %c0_i32 = arith.constant 0 : i32
    %c0_i32_0 = arith.constant 0 : i32
    return %arg0, %c0_i32 : i32, i32
  }
  func.func @transform_1(%arg0: i32) -> (i32, i32) {
    %c0_i32 = arith.constant 0 : i32
    %c0_i32_0 = arith.constant 0 : i32
    return %arg0, %c0_i32 : i32, i32
  }
  func.func @transform_2(%arg0: i32) -> (i32, i32) {
    %c0_i32 = arith.constant 0 : i32
    %c0_i32_0 = arith.constant 0 : i32
    %c0_i32_1 = arith.constant 0 : i32
    return %c0_i32, %c0_i32_0 : i32, i32
  }
  func.func @transform_3(%arg0: i32) -> (i32, i32) {
    %c0_i32 = arith.constant 0 : i32
    %c0_i32_0 = arith.constant 0 : i32
    %c0_i32_1 = arith.constant 0 : i32
    return %c0_i32, %c0_i32_0 : i32, i32
  }
  func.func @transform_4(%arg0: i32) -> (i32, i32) {
    %c0_i32 = arith.constant 0 : i32
    %c0_i32_0 = arith.constant 0 : i32
    %c0_i32_1 = arith.constant 0 : i32
    return %c0_i32, %c0_i32_0 : i32, i32
  }
  func.func @transform_5(%arg0: i32) -> (i32, i32) {
    %c0_i32 = arith.constant 0 : i32
    %c0_i32_0 = arith.constant 0 : i32
    return %arg0, %c0_i32 : i32, i32
  }
}

</mosaic_0001>

<llo_original>
// kernel: tpu_custom_call.1
$region0: #{tpu_custom_call.1}
  #allocation0 [shape = 'u32[]', space=smem, size = 0x4, offset = 0x4, fixed_abs, tag = 'smem constant byte address 0x4 - core index']
  #allocation1 [shape = 'u32[72,128]{1,0:T(1,128)}', space=vmem, size = 0x9000, scoped, tag = 'internal scratch']
  %s0 = inlined_call_operand.vmem [shape: f32[304,32], index: 0, kind: input, shape index: {}]
  %s1 = inlined_call_operand.vmem [shape: f32[304,8], index: 1, kind: input, shape index: {}]
  %s2 = inlined_call_operand.vmem [shape: f32[32,32], index: 2, kind: input, shape index: {}]
  %s3 = inlined_call_operand.vmem [shape: f32[8,32], index: 3, kind: input, shape index: {}]
  %s4 = inlined_call_operand.vmem [shape: f32[1,32], index: 4, kind: input, shape index: {}]
  %s5 = inlined_call_operand.vmem [shape: f32[304,32], index: 5, kind: output, shape index: {}]
  %s6 = sld [smem:[#allocation0]]
  $region53: #{tpu_custom_call.1} parent=0
    _
  %s8 = ssub.s32 1, %s6
  %s9 = scalar_select 0, %s8, %s6
  loop: start=0, step=1, limit=4
  $region2: #{tpu_custom_call.1} parent=0 // loop_pre_header
    _
  $region3: #{tpu_custom_call.1} parent=0 // loop_header
    %s11 = sphi 0, %s15
    %p12 = scmp.ge.s32.totalorder %s11, 4
    %s21 = sphi 0, %s23
    %s24 = sphi 0, %s21
    %s25 = sphi 0, %s24
    %s41 = sphi 0, %s25
    %s47 = sphi 0, %s49
    %s50 = sphi 0, %s47
    %s51 = sphi 0, %s50
    %s67 = sphi 0, %s51
    %s71 = sphi 0, %s71
    %s73 = sphi 0, %s71
    %s74 = sphi 0, %s73
    %s88 = sphi 0, %s74
    %s92 = sphi 0, %s92
    %s94 = sphi 0, %s92
    %s95 = sphi 0, %s94
    %s109 = sphi 0, %s95
    %s113 = sphi 0, %s113
    %s115 = sphi 0, %s113
    %s116 = sphi 0, %s115
    %s130 = sphi 0, %s116
    %s136 = sphi 0, %s138
    %s139 = sphi 0, %s136
    %s140 = sphi 0, %s139
    %s156 = sphi 0, %s140
  $region4: #{tpu_custom_call.1} parent=0 // loop_header_branch
    %14 = sbr.rel (%p12) target = $region8
  $region5: #{tpu_custom_call.1} parent=0 // loop_body
    %s16 = ssub.s32 %s11, 1
    %s17 = ssub.s32 %s11, 2
    %s18 = sadd.s32 %s11, 1
    %s19 = ssub.s32 %s11, %s18
    %p20 = scmp.eq.s32.totalorder %s19, 0
    %s22 = sadd.s32 %s21, 1
    %s23 = scalar_select %p20, %s21, %s22
    %p26 = pneg %p20
    %p27 = scmp.eq.s32.totalorder %s11, 1
    %p28 = por %p26, %p27
    %p29 = scmp.ne.s32.totalorder %s21, %s24
    %p30 = scmp.eq.s32.totalorder %s11, 0
    %p31 = por %p29, %p30
    %p32 = scmp.ne.s32.totalorder %s21, %s24
    %p33 = scmp.eq.s32.totalorder %s16, 1
    %p34 = por %p32, %p33
    %p35 = scmp.ne.s32.totalorder %s24, %s25
    %p36 = scmp.eq.s32.totalorder %s16, 0
    %p37 = por %p35, %p36
    %p38 = scmp.ne.s32.totalorder %s24, %s25
    %p39 = scmp.eq.s32.totalorder %s17, 1
    %p40 = por %p38, %p39
    %p42 = scmp.ne.s32.totalorder %s25, %s41
    %p43 = scmp.eq.s32.totalorder %s17, 0
    %p44 = por %p42, %p43
    %s45 = ssub.s32 %s11, %s18
    %p46 = scmp.eq.s32.totalorder %s45, 0
    %s48 = sadd.s32 %s47, 1
    %s49 = scalar_select %p46, %s47, %s48
    %p52 = pneg %p46
    %p53 = scmp.eq.s32.totalorder %s11, 1
    %p54 = por %p52, %p53
    %p55 = scmp.ne.s32.totalorder %s47, %s50
    %p56 = scmp.eq.s32.totalorder %s11, 0
    %p57 = por %p55, %p56
    %p58 = scmp.ne.s32.totalorder %s47, %s50
    %p59 = scmp.eq.s32.totalorder %s16, 1
    %p60 = por %p58, %p59
    %p61 = scmp.ne.s32.totalorder %s50, %s51
    %p62 = scmp.eq.s32.totalorder %s16, 0
    %p63 = por %p61, %p62
    %p64 = scmp.ne.s32.totalorder %s50, %s51
    %p65 = scmp.eq.s32.totalorder %s17, 1
    %p66 = por %p64, %p65
    %p68 = scmp.ne.s32.totalorder %s51, %s67
    %p69 = scmp.eq.s32.totalorder %s17, 0
    %p70 = por %p68, %p69
    %s72 = sadd.s32 %s71, 1
    %p75 = scmp.eq.s32.totalorder %s11, 1
    %p76 = scmp.ne.s32.totalorder %s71, %s73
    %p77 = scmp.eq.s32.totalorder %s11, 0
    %p78 = por %p76, %p77
    %p79 = scmp.ne.s32.totalorder %s71, %s73
    %p80 = scmp.eq.s32.totalorder %s16, 1
    %p81 = por %p79, %p80
    %p82 = scmp.ne.s32.totalorder %s73, %s74
    %p83 = scmp.eq.s32.totalorder %s16, 0
    %p84 = por %p82, %p83
    %p85 = scmp.ne.s32.totalorder %s73, %s74
    %p86 = scmp.eq.s32.totalorder %s17, 1
    %p87 = por %p85, %p86
    %p89 = scmp.ne.s32.totalorder %s74, %s88
    %p90 = scmp.eq.s32.totalorder %s17, 0
    %p91 = por %p89, %p90
    %s93 = sadd.s32 %s92, 1
    %p96 = scmp.eq.s32.totalorder %s11, 1
    %p97 = scmp.ne.s32.totalorder %s92, %s94
    %p98 = scmp.eq.s32.totalorder %s11, 0
    %p99 = por %p97, %p98
    %p100 = scmp.ne.s32.totalorder %s92, %s94
    %p101 = scmp.eq.s32.totalorder %s16, 1
    %p102 = por %p100, %p101
    %p103 = scmp.ne.s32.totalorder %s94, %s95
    %p104 = scmp.eq.s32.totalorder %s16, 0
    %p105 = por %p103, %p104
    %p106 = scmp.ne.s32.totalorder %s94, %s95
    %p107 = scmp.eq.s32.totalorder %s17, 1
    %p108 = por %p106, %p107
    %p110 = scmp.ne.s32.totalorder %s95, %s109
    %p111 = scmp.eq.s32.totalorder %s17, 0
    %p112 = por %p110, %p111
    %s114 = sadd.s32 %s113, 1
    %p117 = scmp.eq.s32.totalorder %s11, 1
    %p118 = scmp.ne.s32.totalorder %s113, %s115
    %p119 = scmp.eq.s32.totalorder %s11, 0
    %p120 = por %p118, %p119
    %p121 = scmp.ne.s32.totalorder %s113, %s115
    %p122 = scmp.eq.s32.totalorder %s16, 1
    %p123 = por %p121, %p122
    %p124 = scmp.ne.s32.totalorder %s115, %s116
    %p125 = scmp.eq.s32.totalorder %s16, 0
    %p126 = por %p124, %p125
    %p127 = scmp.ne.s32.totalorder %s115, %s116
    %p128 = scmp.eq.s32.totalorder %s17, 1
    %p129 = por %p127, %p128
    %p131 = scmp.ne.s32.totalorder %s116, %s130
    %p132 = scmp.eq.s32.totalorder %s17, 0
    %p133 = por %p131, %p132
    %s134 = ssub.s32 %s11, %s18
    %p135 = scmp.eq.s32.totalorder %s134, 0
    %s137 = sadd.s32 %s136, 1
    %s138 = scalar_select %p135, %s136, %s137
    %p141 = pneg %p135
    %p142 = scmp.eq.s32.totalorder %s11, 1
    %p143 = por %p141, %p142
    %p144 = scmp.ne.s32.totalorder %s136, %s139
    %p145 = scmp.eq.s32.totalorder %s11, 0
    %p146 = por %p144, %p145
    %p147 = scmp.ne.s32.totalorder %s136, %s139
    %p148 = scmp.eq.s32.totalorder %s16, 1
    %p149 = por %p147, %p148
    %p150 = scmp.ne.s32.totalorder %s139, %s140
    %p151 = scmp.eq.s32.totalorder %s16, 0
    %p152 = por %p150, %p151
    %p153 = scmp.ne.s32.totalorder %s139, %s140
    %p154 = scmp.eq.s32.totalorder %s17, 1
    %p155 = por %p153, %p154
    %p157 = scmp.ne.s32.totalorder %s140, %s156
    %p158 = scmp.eq.s32.totalorder %s17, 0
    %p159 = por %p157, %p158
    %p160 = scmp.le.s32.totalorder 1, %s11
    %p161 = scmp.lt.s32.totalorder %s11, 3
    %p162 = pnand %p160, %p161
    %p163 = pneg %p162
    // Predicated region
    $region9: #{tpu_custom_call.1} parent=5 // pred_check
      _
    $region10: #{tpu_custom_call.1} parent=5 // pred_check_branch
      %165 = sbr.rel (%p162) target = $region12
    $region11: #{tpu_custom_call.1} parent=5 // pred_region
      %s166 = ssub.s32 %s11, 1
      // Predicated region
      $region13: #{tpu_custom_call.1} parent=11 // pred_check
        %p167 = pneg %p84
      $region14: #{tpu_custom_call.1} parent=11 // pred_check_branch
        %169 = sbr.rel (%p167) target = $region16
      $region15: #{tpu_custom_call.1} parent=11 // pred_region
        _
      $region16: #{tpu_custom_call.1} parent=11 // pred_fallthru
        _
      // Predicated region
      $region17: #{tpu_custom_call.1} parent=11 // pred_check
        %p170 = pneg %p105
      $region18: #{tpu_custom_call.1} parent=11 // pred_check_branch
        %172 = sbr.rel (%p170) target = $region20
      $region19: #{tpu_custom_call.1} parent=11 // pred_region
        _
      $region20: #{tpu_custom_call.1} parent=11 // pred_fallthru
        _
      // Predicated region
      $region21: #{tpu_custom_call.1} parent=11 // pred_check
        %p173 = pneg %p126
      $region22: #{tpu_custom_call.1} parent=11 // pred_check_branch
        %175 = sbr.rel (%p173) target = $region24
      $region23: #{tpu_custom_call.1} parent=11 // pred_region
        _
      $region24: #{tpu_custom_call.1} parent=11 // pred_fallthru
        _
    $region12: #{tpu_custom_call.1} parent=5 // pred_fallthru
      _
    %p176 = scmp.lt.s32.totalorder %s11, 2
    // Predicated region
    $region25: #{tpu_custom_call.1} parent=5 // pred_check
      %p177 = pneg %p176
    $region26: #{tpu_custom_call.1} parent=5 // pred_check_branch
      %179 = sbr.rel (%p177) target = $region28
    $region27: #{tpu_custom_call.1} parent=5 // pred_region
      // Predicated region
      $region29: #{tpu_custom_call.1} parent=27 // pred_check
        %p180 = pneg %p31
      $region30: #{tpu_custom_call.1} parent=27 // pred_check_branch
        %182 = sbr.rel (%p180) target = $region32
      $region31: #{tpu_custom_call.1} parent=27 // pred_region
        %s183 = smul.u32 19, %s11
        %p184 = scmp.lt.s32.totalorder %s183, 37
        %s185 = scalar_select %p184, %s183, 37
        %s186 = smul.addr %s185, 8
        %s187 = scalar_lea.vmem %s0, %s186
        %s188 = smul.u32 19, %s11
      $region32: #{tpu_custom_call.1} parent=27 // pred_fallthru
        _
      // Predicated region
      $region33: #{tpu_custom_call.1} parent=27 // pred_check
        %p189 = pneg %p57
      $region34: #{tpu_custom_call.1} parent=27 // pred_check_branch
        %191 = sbr.rel (%p189) target = $region36
      $region35: #{tpu_custom_call.1} parent=27 // pred_region
        %s192 = smul.u32 19, %s11
        %p193 = scmp.lt.s32.totalorder %s192, 37
        %s194 = scalar_select %p193, %s192, 37
        %s195 = smul.addr %s194, 8
        %s196 = scalar_lea.vmem %s1, %s195
        %s197 = smul.u32 19, %s11
      $region36: #{tpu_custom_call.1} parent=27 // pred_fallthru
        _
    $region28: #{tpu_custom_call.1} parent=5 // pred_fallthru
      _
    %p198 = scmp.le.s32.totalorder 1, %s11
    %p199 = scmp.lt.s32.totalorder %s11, 3
    %p200 = pnand %p198, %p199
    %p201 = pneg %p200
    // Predicated region
    $region37: #{tpu_custom_call.1} parent=5 // pred_check
      _
    $region38: #{tpu_custom_call.1} parent=5 // pred_check_branch
      %203 = sbr.rel (%p200) target = $region40
    $region39: #{tpu_custom_call.1} parent=5 // pred_region
      %s204 = ssub.s32 %s11, 1
      %s205 = smul.u32 19, %s16
      %p206 = scmp.lt.s32.totalorder %s205, 37
      %s207 = scalar_select %p206, %s205, 37
      %s208 = smul.addr %s207, 8
      %s209 = scalar_lea.vmem %s0, %s208
      %p210 = pneg %p37
      %p211 = pneg %p34
      %s212 = smul.u32 19, %s16
      %p213 = scmp.lt.s32.totalorder %s212, 37
      %s214 = scalar_select %p213, %s212, 37
      %s215 = smul.addr %s214, 8
      %s216 = scalar_lea.vmem %s1, %s215
      %p217 = pneg %p63
      %p218 = pneg %p60
      %p219 = pneg %p84
      %p220 = pneg %p81
      %p221 = pneg %p105
      %p222 = pneg %p102
      %p223 = pneg %p126
      %p224 = pneg %p123
      %p225 = pneg %p152
      %p226 = pneg %p149
      %s227 = smul.u32 19, %s16
      %p228 = scmp.lt.s32.totalorder %s227, 37
      %s229 = scalar_select %p228, %s227, 37
      %s230 = smul.addr %s229, 8
      %s231 = scalar_lea.vmem %s5, %s230
      %s232 = smul.u32 19, %s16
      %p233 = scmp.lt.s32.totalorder %s232, 37
      %s234 = scalar_select %p233, %s232, 37
      %s235 = smul.addr %s234, 8
      %s236 = scalar_lea.vmem %s0, %s235
      %s237 = smul.u32 19, %s16
      %s238 = smul.u32 19, %s16
      %p239 = scmp.lt.s32.totalorder %s238, 37
      %s240 = scalar_select %p239, %s238, 37
      %s241 = smul.addr %s240, 8
      %s242 = scalar_lea.vmem %s1, %s241
      %s243 = smul.u32 19, %s16
      %s244 = smul.u32 19, %s16
      %p245 = scmp.lt.s32.totalorder %s244, 37
      %s246 = scalar_select %p245, %s244, 37
      %s247 = smul.addr %s246, 8
      %s248 = scalar_lea.vmem %s5, %s247
      %s249 = smul.u32 19, %s16
      %v250 = vld [vmem:[%s236] sm:$0xff]
      %v251 = vld [vmem:[%s236 + $0x8] sm:$0xff]
      %v252 = vld [vmem:[%s236 + $0x10] sm:$0xff]
      %v253 = vld [vmem:[%s236 + $0x18] sm:$0xff]
      %v254 = vld [vmem:[%s236 + $0x20] sm:$0xff]
      %v255 = vld [vmem:[%s236 + $0x28] sm:$0xff]
      %v256 = vld [vmem:[%s236 + $0x30] sm:$0xff]
      %v257 = vld [vmem:[%s236 + $0x38] sm:$0xff]
      %v258 = vld [vmem:[%s236 + $0x40] sm:$0xff]
      %v259 = vld [vmem:[%s236 + $0x48] sm:$0xff]
      %v260 = vld [vmem:[%s236 + $0x50] sm:$0xff]
      %v261 = vld [vmem:[%s236 + $0x58] sm:$0xff]
      %v262 = vld [vmem:[%s236 + $0x60] sm:$0xff]
      %v263 = vld [vmem:[%s236 + $0x68] sm:$0xff]
      %v264 = vld [vmem:[%s236 + $0x70] sm:$0xff]
      %v265 = vld [vmem:[%s236 + $0x78] sm:$0xff]
      %v266 = vld [vmem:[%s236 + $0x80] sm:$0xff]
      %v267 = vld [vmem:[%s236 + $0x88] sm:$0xff]
      %v268 = vld [vmem:[%s236 + $0x90] sm:$0xff]
      %v269 = vld [vmem:[%s2] sm:$0xff]
      %v270 = vld [vmem:[%s2 + $0x8] sm:$0xff]
      %v271 = vld [vmem:[%s2 + $0x10] sm:$0xff]
      %v272 = vld [vmem:[%s2 + $0x18] sm:$0xff]
      %v273 = vld [vmem:[%s242] sm:$0xff]
      %v274 = vld [vmem:[%s242 + $0x8] sm:$0xff]
      %v275 = vld [vmem:[%s242 + $0x10] sm:$0xff]
      %v276 = vld [vmem:[%s242 + $0x18] sm:$0xff]
      %v277 = vld [vmem:[%s242 + $0x20] sm:$0xff]
      %v278 = vld [vmem:[%s242 + $0x28] sm:$0xff]
      %v279 = vld [vmem:[%s242 + $0x30] sm:$0xff]
      %v280 = vld [vmem:[%s242 + $0x38] sm:$0xff]
      %v281 = vld [vmem:[%s242 + $0x40] sm:$0xff]
      %v282 = vld [vmem:[%s242 + $0x48] sm:$0xff]
      %v283 = vld [vmem:[%s242 + $0x50] sm:$0xff]
      %v284 = vld [vmem:[%s242 + $0x58] sm:$0xff]
      %v285 = vld [vmem:[%s242 + $0x60] sm:$0xff]
      %v286 = vld [vmem:[%s242 + $0x68] sm:$0xff]
      %v287 = vld [vmem:[%s242 + $0x70] sm:$0xff]
      %v288 = vld [vmem:[%s242 + $0x78] sm:$0xff]
      %v289 = vld [vmem:[%s242 + $0x80] sm:$0xff]
      %v290 = vld [vmem:[%s242 + $0x88] sm:$0xff]
      %v291 = vld [vmem:[%s242 + $0x90] sm:$0xff]
      %v292 = vld [vmem:[%s3] sm:$0xff]
      %vm293 = vcmask 64512
      %v295 = vsel %vm293, %v273, 0
      %v298 = vsel %vm293, %v274, 0
      %v301 = vsel %vm293, %v275, 0
      %v304 = vsel %vm293, %v276, 0
      %v307 = vsel %vm293, %v277, 0
      %v310 = vsel %vm293, %v278, 0
      %v313 = vsel %vm293, %v279, 0
      %v316 = vsel %vm293, %v280, 0
      %v319 = vsel %vm293, %v281, 0
      %v322 = vsel %vm293, %v282, 0
      %v325 = vsel %vm293, %v283, 0
      %v328 = vsel %vm293, %v284, 0
      %v331 = vsel %vm293, %v285, 0
      %v334 = vsel %vm293, %v286, 0
      %v337 = vsel %vm293, %v287, 0
      %v340 = vsel %vm293, %v288, 0
      %v343 = vsel %vm293, %v289, 0
      %v346 = vsel %vm293, %v290, 0
      %v349 = vsel %vm293, %v291, 0
      %351 = vmatpush.msra.mxu0 0.0
      %352 = vmatpush.msra.mxu0 0.0
      %353 = vmatpush.msra.mxu0 0.0
      %354 = vmatpush.msra.mxu0 0.0
      %355 = vmatpush.msra.mxu0 0.0
      %356 = vmatpush.msra.mxu0 0.0
      %357 = vmatpush.msra.mxu0 0.0
      %358 = vmatpush.msra.mxu0 0.0
      %359 = vmatpush.msra.mxu0 0.0
      %360 = vmatpush.msra.mxu0 0.0
      %361 = vmatpush.msra.mxu0 0.0
      %362 = vmatpush.msra.mxu0 0.0
      %363 = vmatpush.msra.mxu0 0.0
      %364 = vmatpush.msra.mxu0 0.0
      %365 = vmatpush.msra.mxu0 0.0
      %v366 = vand.u32 %v292, 4294901760
      %367 = vmatpush.msra.mxu0 %v366
      %v368 = vand.u32 %v295, 4294901760
      %v369 = vsub.f32 %v295, %v368
      %v370 = vand.u32 %v369, 4294901760
      %v371 = vsub.f32 %v369, %v370
      %v372 = vand.u32 %v371, 4294901760
      %373 = vmatmul.f32.gmra.mxu0 %v372
      %v374 = vpop.f32.mrf.mxu0
      %v375 = vadd.f32 0.0, %v374
      %v376 = vand.u32 %v298, 4294901760
      %v377 = vsub.f32 %v298, %v376
      %v378 = vand.u32 %v377, 4294901760
      %v379 = vsub.f32 %v377, %v378
      %v380 = vand.u32 %v379, 4294901760
      %381 = vmatmul.f32.gmra.mxu0 %v380
      %v382 = vpop.f32.mrf.mxu0
      %v383 = vadd.f32 0.0, %v382
      %v384 = vand.u32 %v301, 4294901760
      %v385 = vsub.f32 %v301, %v384
      %v386 = vand.u32 %v385, 4294901760
      %v387 = vsub.f32 %v385, %v386
      %v388 = vand.u32 %v387, 4294901760
      %389 = vmatmul.f32.gmra.mxu0 %v388
      %v390 = vpop.f32.mrf.mxu0
      %v391 = vadd.f32 0.0, %v390
      %v392 = vand.u32 %v304, 4294901760
      %v393 = vsub.f32 %v304, %v392
      %v394 = vand.u32 %v393, 4294901760
      %v395 = vsub.f32 %v393, %v394
      %v396 = vand.u32 %v395, 4294901760
      %397 = vmatmul.f32.gmra.mxu0 %v396
      %v398 = vpop.f32.mrf.mxu0
      %v399 = vadd.f32 0.0, %v398
      %v400 = vand.u32 %v307, 4294901760
      %v401 = vsub.f32 %v307, %v400
      %v402 = vand.u32 %v401, 4294901760
      %v403 = vsub.f32 %v401, %v402
      %v404 = vand.u32 %v403, 4294901760
      %405 = vmatmul.f32.gmra.mxu0 %v404
      %v406 = vpop.f32.mrf.mxu0
      %v407 = vadd.f32 0.0, %v406
      %v408 = vand.u32 %v310, 4294901760
      %v409 = vsub.f32 %v310, %v408
      %v410 = vand.u32 %v409, 4294901760
      %v411 = vsub.f32 %v409, %v410
      %v412 = vand.u32 %v411, 4294901760
      %413 = vmatmul.f32.gmra.mxu0 %v412
      %v414 = vpop.f32.mrf.mxu0
      %v415 = vadd.f32 0.0, %v414
      %v416 = vand.u32 %v313, 4294901760
      %v417 = vsub.f32 %v313, %v416
      %v418 = vand.u32 %v417, 4294901760
      %v419 = vsub.f32 %v417, %v418
      %v420 = vand.u32 %v419, 4294901760
      %421 = vmatmul.f32.gmra.mxu0 %v420
      %v422 = vpop.f32.mrf.mxu0
      %v423 = vadd.f32 0.0, %v422
      %v424 = vand.u32 %v316, 4294901760
      %v425 = vsub.f32 %v316, %v424
      %v426 = vand.u32 %v425, 4294901760
      %v427 = vsub.f32 %v425, %v426
      %v428 = vand.u32 %v427, 4294901760
      %429 = vmatmul.f32.gmra.mxu0 %v428
      %v430 = vpop.f32.mrf.mxu0
      %v431 = vadd.f32 0.0, %v430
      %v432 = vand.u32 %v319, 4294901760
      %v433 = vsub.f32 %v319, %v432
      %v434 = vand.u32 %v433, 4294901760
      %v435 = vsub.f32 %v433, %v434
      %v436 = vand.u32 %v435, 4294901760
      %437 = vmatmul.f32.gmra.mxu0 %v436
      %v438 = vpop.f32.mrf.mxu0
      %v439 = vadd.f32 0.0, %v438
      %v440 = vand.u32 %v322, 4294901760
      %v441 = vsub.f32 %v322, %v440
      %v442 = vand.u32 %v441, 4294901760
      %v443 = vsub.f32 %v441, %v442
      %v444 = vand.u32 %v443, 4294901760
      %445 = vmatmul.f32.gmra.mxu0 %v444
      %v446 = vpop.f32.mrf.mxu0
      %v447 = vadd.f32 0.0, %v446
      %v448 = vand.u32 %v325, 4294901760
      %v449 = vsub.f32 %v325, %v448
      %v450 = vand.u32 %v449, 4294901760
      %v451 = vsub.f32 %v449, %v450
      %v452 = vand.u32 %v451, 4294901760
      %453 = vmatmul.f32.gmra.mxu0 %v452
      %v454 = vpop.f32.mrf.mxu0
      %v455 = vadd.f32 0.0, %v454
      %v456 = vand.u32 %v328, 4294901760
      %v457 = vsub.f32 %v328, %v456
      %v458 = vand.u32 %v457, 4294901760
      %v459 = vsub.f32 %v457, %v458
      %v460 = vand.u32 %v459, 4294901760
      %461 = vmatmul.f32.gmra.mxu0 %v460
      %v462 = vpop.f32.mrf.mxu0
      %v463 = vadd.f32 0.0, %v462
      %v464 = vand.u32 %v331, 4294901760
      %v465 = vsub.f32 %v331, %v464
      %v466 = vand.u32 %v465, 4294901760
      %v467 = vsub.f32 %v465, %v466
      %v468 = vand.u32 %v467, 4294901760
      %469 = vmatmul.f32.gmra.mxu0 %v468
      %v470 = vpop.f32.mrf.mxu0
      %v471 = vadd.f32 0.0, %v470
      %v472 = vand.u32 %v334, 4294901760
      %v473 = vsub.f32 %v334, %v472
      %v474 = vand.u32 %v473, 4294901760
      %v475 = vsub.f32 %v473, %v474
      %v476 = vand.u32 %v475, 4294901760
      %477 = vmatmul.f32.gmra.mxu0 %v476
      %v478 = vpop.f32.mrf.mxu0
      %v479 = vadd.f32 0.0, %v478
      %v480 = vand.u32 %v337, 4294901760
      %v481 = vsub.f32 %v337, %v480
      %v482 = vand.u32 %v481, 4294901760
      %v483 = vsub.f32 %v481, %v482
      %v484 = vand.u32 %v483, 4294901760
      %485 = vmatmul.f32.gmra.mxu0 %v484
      %v486 = vpop.f32.mrf.mxu0
      %v487 = vadd.f32 0.0, %v486
      %v488 = vand.u32 %v340, 4294901760
      %v489 = vsub.f32 %v340, %v488
      %v490 = vand.u32 %v489, 4294901760
      %v491 = vsub.f32 %v489, %v490
      %v492 = vand.u32 %v491, 4294901760
      %493 = vmatmul.f32.gmra.mxu0 %v492
      %v494 = vpop.f32.mrf.mxu0
      %v495 = vadd.f32 0.0, %v494
      %v496 = vand.u32 %v343, 4294901760
      %v497 = vsub.f32 %v343, %v496
      %v498 = vand.u32 %v497, 4294901760
      %v499 = vsub.f32 %v497, %v498
      %v500 = vand.u32 %v499, 4294901760
      %501 = vmatmul.f32.gmra.mxu0 %v500
      %v502 = vpop.f32.mrf.mxu0
      %v503 = vadd.f32 0.0, %v502
      %v504 = vand.u32 %v346, 4294901760
      %v505 = vsub.f32 %v346, %v504
      %v506 = vand.u32 %v505, 4294901760
      %v507 = vsub.f32 %v505, %v506
      %v508 = vand.u32 %v507, 4294901760
      %509 = vmatmul.f32.gmra.mxu0 %v508
      %v510 = vpop.f32.mrf.mxu0
      %v511 = vadd.f32 0.0, %v510
      %v512 = vand.u32 %v349, 4294901760
      %v513 = vsub.f32 %v349, %v512
      %v514 = vand.u32 %v513, 4294901760
      %v515 = vsub.f32 %v513, %v514
      %v516 = vand.u32 %v515, 4294901760
      %517 = vmatmul.f32.gmra.mxu0 %v516
      %v518 = vpop.f32.mrf.mxu0
      %v519 = vadd.f32 0.0, %v518
      %520 = vdwg.mxu0
      %521 = vmatpush.msra.mxu0 0.0
      %522 = vmatpush.msra.mxu0 0.0
      %523 = vmatpush.msra.mxu0 0.0
      %524 = vmatpush.msra.mxu0 0.0
      %525 = vmatpush.msra.mxu0 0.0
      %526 = vmatpush.msra.mxu0 0.0
      %527 = vmatpush.msra.mxu0 0.0
      %528 = vmatpush.msra.mxu0 0.0
      %529 = vmatpush.msra.mxu0 0.0
      %530 = vmatpush.msra.mxu0 0.0
      %531 = vmatpush.msra.mxu0 0.0
      %532 = vmatpush.msra.mxu0 0.0
      %533 = vmatpush.msra.mxu0 0.0
      %534 = vmatpush.msra.mxu0 0.0
      %535 = vmatpush.msra.mxu0 0.0
      %v536 = vand.u32 %v292, 4294901760
      %v537 = vsub.f32 %v292, %v536
      %v538 = vand.u32 %v537, 4294901760
      %v539 = vsub.f32 %v537, %v538
      %v540 = vand.u32 %v539, 4294901760
      %541 = vmatpush.msra.mxu0 %v540
      %v542 = vand.u32 %v295, 4294901760
      %543 = vmatmul.f32.gmra.mxu0 %v542
      %v544 = vpop.f32.mrf.mxu0
      %v545 = vadd.f32 %v375, %v544
      %v546 = vand.u32 %v298, 4294901760
      %547 = vmatmul.f32.gmra.mxu0 %v546
      %v548 = vpop.f32.mrf.mxu0
      %v549 = vadd.f32 %v383, %v548
      %v550 = vand.u32 %v301, 4294901760
      %551 = vmatmul.f32.gmra.mxu0 %v550
      %v552 = vpop.f32.mrf.mxu0
      %v553 = vadd.f32 %v391, %v552
      %v554 = vand.u32 %v304, 4294901760
      %555 = vmatmul.f32.gmra.mxu0 %v554
      %v556 = vpop.f32.mrf.mxu0
      %v557 = vadd.f32 %v399, %v556
      %v558 = vand.u32 %v307, 4294901760
      %559 = vmatmul.f32.gmra.mxu0 %v558
      %v560 = vpop.f32.mrf.mxu0
      %v561 = vadd.f32 %v407, %v560
      %v562 = vand.u32 %v310, 4294901760
      %563 = vmatmul.f32.gmra.mxu0 %v562
      %v564 = vpop.f32.mrf.mxu0
      %v565 = vadd.f32 %v415, %v564
      %v566 = vand.u32 %v313, 4294901760
      %567 = vmatmul.f32.gmra.mxu0 %v566
      %v568 = vpop.f32.mrf.mxu0
      %v569 = vadd.f32 %v423, %v568
      %v570 = vand.u32 %v316, 4294901760
      %571 = vmatmul.f32.gmra.mxu0 %v570
      %v572 = vpop.f32.mrf.mxu0
      %v573 = vadd.f32 %v431, %v572
      %v574 = vand.u32 %v319, 4294901760
      %575 = vmatmul.f32.gmra.mxu0 %v574
      %v576 = vpop.f32.mrf.mxu0
      %v577 = vadd.f32 %v439, %v576
      %v578 = vand.u32 %v322, 4294901760
      %579 = vmatmul.f32.gmra.mxu0 %v578
      %v580 = vpop.f32.mrf.mxu0
      %v581 = vadd.f32 %v447, %v580
      %v582 = vand.u32 %v325, 4294901760
      %583 = vmatmul.f32.gmra.mxu0 %v582
      %v584 = vpop.f32.mrf.mxu0
      %v585 = vadd.f32 %v455, %v584
      %v586 = vand.u32 %v328, 4294901760
      %587 = vmatmul.f32.gmra.mxu0 %v586
      %v588 = vpop.f32.mrf.mxu0
      %v589 = vadd.f32 %v463, %v588
      %v590 = vand.u32 %v331, 4294901760
      %591 = vmatmul.f32.gmra.mxu0 %v590
      %v592 = vpop.f32.mrf.mxu0
      %v593 = vadd.f32 %v471, %v592
      %v594 = vand.u32 %v334, 4294901760
      %595 = vmatmul.f32.gmra.mxu0 %v594
      %v596 = vpop.f32.mrf.mxu0
      %v597 = vadd.f32 %v479, %v596
      %v598 = vand.u32 %v337, 4294901760
      %599 = vmatmul.f32.gmra.mxu0 %v598
      %v600 = vpop.f32.mrf.mxu0
      %v601 = vadd.f32 %v487, %v600
      %v602 = vand.u32 %v340, 4294901760
      %603 = vmatmul.f32.gmra.mxu0 %v602
      %v604 = vpop.f32.mrf.mxu0
      %v605 = vadd.f32 %v495, %v604
      %v606 = vand.u32 %v343, 4294901760
      %607 = vmatmul.f32.gmra.mxu0 %v606
      %v608 = vpop.f32.mrf.mxu0
      %v609 = vadd.f32 %v503, %v608
      %v610 = vand.u32 %v346, 4294901760
      %611 = vmatmul.f32.gmra.mxu0 %v610
      %v612 = vpop.f32.mrf.mxu0
      %v613 = vadd.f32 %v511, %v612
      %v614 = vand.u32 %v349, 4294901760
      %615 = vmatmul.f32.gmra.mxu0 %v614
      %v616 = vpop.f32.mrf.mxu0
      %v617 = vadd.f32 %v519, %v616
      %618 = vdwg.mxu0
      %619 = vmatpush.msra.mxu0 0.0
      %620 = vmatpush.msra.mxu0 0.0
      %621 = vmatpush.msra.mxu0 0.0
      %622 = vmatpush.msra.mxu0 0.0
      %623 = vmatpush.msra.mxu0 0.0
      %624 = vmatpush.msra.mxu0 0.0
      %625 = vmatpush.msra.mxu0 0.0
      %626 = vmatpush.msra.mxu0 0.0
      %627 = vmatpush.msra.mxu0 0.0
      %628 = vmatpush.msra.mxu0 0.0
      %629 = vmatpush.msra.mxu0 0.0
      %630 = vmatpush.msra.mxu0 0.0
      %631 = vmatpush.msra.mxu0 0.0
      %632 = vmatpush.msra.mxu0 0.0
      %633 = vmatpush.msra.mxu0 0.0
      %v634 = vand.u32 %v292, 4294901760
      %v635 = vsub.f32 %v292, %v634
      %636 = vmatpush.msra.mxu0 %v635
      %v637 = vand.u32 %v295, 4294901760
      %v638 = vsub.f32 %v295, %v637
      %639 = vmatmul.f32.gmra.mxu0 %v638
      %v640 = vpop.f32.mrf.mxu0
      %v641 = vadd.f32 %v545, %v640
      %v642 = vand.u32 %v298, 4294901760
      %v643 = vsub.f32 %v298, %v642
      %644 = vmatmul.f32.gmra.mxu0 %v643
      %v645 = vpop.f32.mrf.mxu0
      %v646 = vadd.f32 %v549, %v645
      %v647 = vand.u32 %v301, 4294901760
      %v648 = vsub.f32 %v301, %v647
      %649 = vmatmul.f32.gmra.mxu0 %v648
      %v650 = vpop.f32.mrf.mxu0
      %v651 = vadd.f32 %v553, %v650
      %v652 = vand.u32 %v304, 4294901760
      %v653 = vsub.f32 %v304, %v652
      %654 = vmatmul.f32.gmra.mxu0 %v653
      %v655 = vpop.f32.mrf.mxu0
      %v656 = vadd.f32 %v557, %v655
      %v657 = vand.u32 %v307, 4294901760
      %v658 = vsub.f32 %v307, %v657
      %659 = vmatmul.f32.gmra.mxu0 %v658
      %v660 = vpop.f32.mrf.mxu0
      %v661 = vadd.f32 %v561, %v660
      %v662 = vand.u32 %v310, 4294901760
      %v663 = vsub.f32 %v310, %v662
      %664 = vmatmul.f32.gmra.mxu0 %v663
      %v665 = vpop.f32.mrf.mxu0
      %v666 = vadd.f32 %v565, %v665
      %v667 = vand.u32 %v313, 4294901760
      %v668 = vsub.f32 %v313, %v667
      %669 = vmatmul.f32.gmra.mxu0 %v668
      %v670 = vpop.f32.mrf.mxu0
      %v671 = vadd.f32 %v569, %v670
      %v672 = vand.u32 %v316, 4294901760
      %v673 = vsub.f32 %v316, %v672
      %674 = vmatmul.f32.gmra.mxu0 %v673
      %v675 = vpop.f32.mrf.mxu0
      %v676 = vadd.f32 %v573, %v675
      %v677 = vand.u32 %v319, 4294901760
      %v678 = vsub.f32 %v319, %v677
      %679 = vmatmul.f32.gmra.mxu0 %v678
      %v680 = vpop.f32.mrf.mxu0
      %v681 = vadd.f32 %v577, %v680
      %v682 = vand.u32 %v322, 4294901760
      %v683 = vsub.f32 %v322, %v682
      %684 = vmatmul.f32.gmra.mxu0 %v683
      %v685 = vpop.f32.mrf.mxu0
      %v686 = vadd.f32 %v581, %v685
      %v687 = vand.u32 %v325, 4294901760
      %v688 = vsub.f32 %v325, %v687
      %689 = vmatmul.f32.gmra.mxu0 %v688
      %v690 = vpop.f32.mrf.mxu0
      %v691 = vadd.f32 %v585, %v690
      %v692 = vand.u32 %v328, 4294901760
      %v693 = vsub.f32 %v328, %v692
      %694 = vmatmul.f32.gmra.mxu0 %v693
      %v695 = vpop.f32.mrf.mxu0
      %v696 = vadd.f32 %v589, %v695
      %v697 = vand.u32 %v331, 4294901760
      %v698 = vsub.f32 %v331, %v697
      %699 = vmatmul.f32.gmra.mxu0 %v698
      %v700 = vpop.f32.mrf.mxu0
      %v701 = vadd.f32 %v593, %v700
      %v702 = vand.u32 %v334, 4294901760
      %v703 = vsub.f32 %v334, %v702
      %704 = vmatmul.f32.gmra.mxu0 %v703
      %v705 = vpop.f32.mrf.mxu0
      %v706 = vadd.f32 %v597, %v705
      %v707 = vand.u32 %v337, 4294901760
      %v708 = vsub.f32 %v337, %v707
      %709 = vmatmul.f32.gmra.mxu0 %v708
      %v710 = vpop.f32.mrf.mxu0
      %v711 = vadd.f32 %v601, %v710
      %v712 = vand.u32 %v340, 4294901760
      %v713 = vsub.f32 %v340, %v712
      %714 = vmatmul.f32.gmra.mxu0 %v713
      %v715 = vpop.f32.mrf.mxu0
      %v716 = vadd.f32 %v605, %v715
      %v717 = vand.u32 %v343, 4294901760
      %v718 = vsub.f32 %v343, %v717
      %719 = vmatmul.f32.gmra.mxu0 %v718
      %v720 = vpop.f32.mrf.mxu0
      %v721 = vadd.f32 %v609, %v720
      %v722 = vand.u32 %v346, 4294901760
      %v723 = vsub.f32 %v346, %v722
      %724 = vmatmul.f32.gmra.mxu0 %v723
      %v725 = vpop.f32.mrf.mxu0
      %v726 = vadd.f32 %v613, %v725
      %v727 = vand.u32 %v349, 4294901760
      %v728 = vsub.f32 %v349, %v727
      %729 = vmatmul.f32.gmra.mxu0 %v728
      %v730 = vpop.f32.mrf.mxu0
      %v731 = vadd.f32 %v617, %v730
      %732 = vdwg.mxu0
      %733 = vmatpush.msra.mxu0 0.0
      %734 = vmatpush.msra.mxu0 0.0
      %735 = vmatpush.msra.mxu0 0.0
      %736 = vmatpush.msra.mxu0 0.0
      %737 = vmatpush.msra.mxu0 0.0
      %738 = vmatpush.msra.mxu0 0.0
      %739 = vmatpush.msra.mxu0 0.0
      %740 = vmatpush.msra.mxu0 0.0
      %741 = vmatpush.msra.mxu0 0.0
      %742 = vmatpush.msra.mxu0 0.0
      %743 = vmatpush.msra.mxu0 0.0
      %744 = vmatpush.msra.mxu0 0.0
      %745 = vmatpush.msra.mxu0 0.0
      %746 = vmatpush.msra.mxu0 0.0
      %747 = vmatpush.msra.mxu0 0.0
      %v748 = vand.u32 %v292, 4294901760
      %749 = vmatpush.msra.mxu0 %v748
      %v750 = vand.u32 %v295, 4294901760
      %v751 = vsub.f32 %v295, %v750
      %v752 = vand.u32 %v751, 4294901760
      %753 = vmatmul.f32.gmra.mxu0 %v752
      %v754 = vpop.f32.mrf.mxu0
      %v755 = vadd.f32 %v641, %v754
      %v756 = vand.u32 %v298, 4294901760
      %v757 = vsub.f32 %v298, %v756
      %v758 = vand.u32 %v757, 4294901760
      %759 = vmatmul.f32.gmra.mxu0 %v758
      %v760 = vpop.f32.mrf.mxu0
      %v761 = vadd.f32 %v646, %v760
      %v762 = vand.u32 %v301, 4294901760
      %v763 = vsub.f32 %v301, %v762
      %v764 = vand.u32 %v763, 4294901760
      %765 = vmatmul.f32.gmra.mxu0 %v764
      %v766 = vpop.f32.mrf.mxu0
      %v767 = vadd.f32 %v651, %v766
      %v768 = vand.u32 %v304, 4294901760
      %v769 = vsub.f32 %v304, %v768
      %v770 = vand.u32 %v769, 4294901760
      %771 = vmatmul.f32.gmra.mxu0 %v770
      %v772 = vpop.f32.mrf.mxu0
      %v773 = vadd.f32 %v656, %v772
      %v774 = vand.u32 %v307, 4294901760
      %v775 = vsub.f32 %v307, %v774
      %v776 = vand.u32 %v775, 4294901760
      %777 = vmatmul.f32.gmra.mxu0 %v776
      %v778 = vpop.f32.mrf.mxu0
      %v779 = vadd.f32 %v661, %v778
      %v780 = vand.u32 %v310, 4294901760
      %v781 = vsub.f32 %v310, %v780
      %v782 = vand.u32 %v781, 4294901760
      %783 = vmatmul.f32.gmra.mxu0 %v782
      %v784 = vpop.f32.mrf.mxu0
      %v785 = vadd.f32 %v666, %v784
      %v786 = vand.u32 %v313, 4294901760
      %v787 = vsub.f32 %v313, %v786
      %v788 = vand.u32 %v787, 4294901760
      %789 = vmatmul.f32.gmra.mxu0 %v788
      %v790 = vpop.f32.mrf.mxu0
      %v791 = vadd.f32 %v671, %v790
      %v792 = vand.u32 %v316, 4294901760
      %v793 = vsub.f32 %v316, %v792
      %v794 = vand.u32 %v793, 4294901760
      %795 = vmatmul.f32.gmra.mxu0 %v794
      %v796 = vpop.f32.mrf.mxu0
      %v797 = vadd.f32 %v676, %v796
      %v798 = vand.u32 %v319, 4294901760
      %v799 = vsub.f32 %v319, %v798
      %v800 = vand.u32 %v799, 4294901760
      %801 = vmatmul.f32.gmra.mxu0 %v800
      %v802 = vpop.f32.mrf.mxu0
      %v803 = vadd.f32 %v681, %v802
      %v804 = vand.u32 %v322, 4294901760
      %v805 = vsub.f32 %v322, %v804
      %v806 = vand.u32 %v805, 4294901760
      %807 = vmatmul.f32.gmra.mxu0 %v806
      %v808 = vpop.f32.mrf.mxu0
      %v809 = vadd.f32 %v686, %v808
      %v810 = vand.u32 %v325, 4294901760
      %v811 = vsub.f32 %v325, %v810
      %v812 = vand.u32 %v811, 4294901760
      %813 = vmatmul.f32.gmra.mxu0 %v812
      %v814 = vpop.f32.mrf.mxu0
      %v815 = vadd.f32 %v691, %v814
      %v816 = vand.u32 %v328, 4294901760
      %v817 = vsub.f32 %v328, %v816
      %v818 = vand.u32 %v817, 4294901760
      %819 = vmatmul.f32.gmra.mxu0 %v818
      %v820 = vpop.f32.mrf.mxu0
      %v821 = vadd.f32 %v696, %v820
      %v822 = vand.u32 %v331, 4294901760
      %v823 = vsub.f32 %v331, %v822
      %v824 = vand.u32 %v823, 4294901760
      %825 = vmatmul.f32.gmra.mxu0 %v824
      %v826 = vpop.f32.mrf.mxu0
      %v827 = vadd.f32 %v701, %v826
      %v828 = vand.u32 %v334, 4294901760
      %v829 = vsub.f32 %v334, %v828
      %v830 = vand.u32 %v829, 4294901760
      %831 = vmatmul.f32.gmra.mxu0 %v830
      %v832 = vpop.f32.mrf.mxu0
      %v833 = vadd.f32 %v706, %v832
      %v834 = vand.u32 %v337, 4294901760
      %v835 = vsub.f32 %v337, %v834
      %v836 = vand.u32 %v835, 4294901760
      %837 = vmatmul.f32.gmra.mxu0 %v836
      %v838 = vpop.f32.mrf.mxu0
      %v839 = vadd.f32 %v711, %v838
      %v840 = vand.u32 %v340, 4294901760
      %v841 = vsub.f32 %v340, %v840
      %v842 = vand.u32 %v841, 4294901760
      %843 = vmatmul.f32.gmra.mxu0 %v842
      %v844 = vpop.f32.mrf.mxu0
      %v845 = vadd.f32 %v716, %v844
      %v846 = vand.u32 %v343, 4294901760
      %v847 = vsub.f32 %v343, %v846
      %v848 = vand.u32 %v847, 4294901760
      %849 = vmatmul.f32.gmra.mxu0 %v848
      %v850 = vpop.f32.mrf.mxu0
      %v851 = vadd.f32 %v721, %v850
      %v852 = vand.u32 %v346, 4294901760
      %v853 = vsub.f32 %v346, %v852
      %v854 = vand.u32 %v853, 4294901760
      %855 = vmatmul.f32.gmra.mxu0 %v854
      %v856 = vpop.f32.mrf.mxu0
      %v857 = vadd.f32 %v726, %v856
      %v858 = vand.u32 %v349, 4294901760
      %v859 = vsub.f32 %v349, %v858
      %v860 = vand.u32 %v859, 4294901760
      %861 = vmatmul.f32.gmra.mxu0 %v860
      %v862 = vpop.f32.mrf.mxu0
      %v863 = vadd.f32 %v731, %v862
      %864 = vdwg.mxu0
      %865 = vmatpush.msra.mxu0 0.0
      %866 = vmatpush.msra.mxu0 0.0
      %867 = vmatpush.msra.mxu0 0.0
      %868 = vmatpush.msra.mxu0 0.0
      %869 = vmatpush.msra.mxu0 0.0
      %870 = vmatpush.msra.mxu0 0.0
      %871 = vmatpush.msra.mxu0 0.0
      %872 = vmatpush.msra.mxu0 0.0
      %873 = vmatpush.msra.mxu0 0.0
      %874 = vmatpush.msra.mxu0 0.0
      %875 = vmatpush.msra.mxu0 0.0
      %876 = vmatpush.msra.mxu0 0.0
      %877 = vmatpush.msra.mxu0 0.0
      %878 = vmatpush.msra.mxu0 0.0
      %879 = vmatpush.msra.mxu0 0.0
      %v880 = vand.u32 %v292, 4294901760
      %v881 = vsub.f32 %v292, %v880
      %v882 = vand.u32 %v881, 4294901760
      %883 = vmatpush.msra.mxu0 %v882
      %v884 = vand.u32 %v295, 4294901760
      %885 = vmatmul.f32.gmra.mxu0 %v884
      %v886 = vpop.f32.mrf.mxu0
      %v887 = vadd.f32 %v755, %v886
      %v888 = vand.u32 %v298, 4294901760
      %889 = vmatmul.f32.gmra.mxu0 %v888
      %v890 = vpop.f32.mrf.mxu0
      %v891 = vadd.f32 %v761, %v890
      %v892 = vand.u32 %v301, 4294901760
      %893 = vmatmul.f32.gmra.mxu0 %v892
      %v894 = vpop.f32.mrf.mxu0
      %v895 = vadd.f32 %v767, %v894
      %v896 = vand.u32 %v304, 4294901760
      %897 = vmatmul.f32.gmra.mxu0 %v896
      %v898 = vpop.f32.mrf.mxu0
      %v899 = vadd.f32 %v773, %v898
      %v900 = vand.u32 %v307, 4294901760
      %901 = vmatmul.f32.gmra.mxu0 %v900
      %v902 = vpop.f32.mrf.mxu0
      %v903 = vadd.f32 %v779, %v902
      %v904 = vand.u32 %v310, 4294901760
      %905 = vmatmul.f32.gmra.mxu0 %v904
      %v906 = vpop.f32.mrf.mxu0
      %v907 = vadd.f32 %v785, %v906
      %v908 = vand.u32 %v313, 4294901760
      %909 = vmatmul.f32.gmra.mxu0 %v908
      %v910 = vpop.f32.mrf.mxu0
      %v911 = vadd.f32 %v791, %v910
      %v912 = vand.u32 %v316, 4294901760
      %913 = vmatmul.f32.gmra.mxu0 %v912
      %v914 = vpop.f32.mrf.mxu0
      %v915 = vadd.f32 %v797, %v914
      %v916 = vand.u32 %v319, 4294901760
      %917 = vmatmul.f32.gmra.mxu0 %v916
      %v918 = vpop.f32.mrf.mxu0
      %v919 = vadd.f32 %v803, %v918
      %v920 = vand.u32 %v322, 4294901760
      %921 = vmatmul.f32.gmra.mxu0 %v920
      %v922 = vpop.f32.mrf.mxu0
      %v923 = vadd.f32 %v809, %v922
      %v924 = vand.u32 %v325, 4294901760
      %925 = vmatmul.f32.gmra.mxu0 %v924
      %v926 = vpop.f32.mrf.mxu0
      %v927 = vadd.f32 %v815, %v926
      %v928 = vand.u32 %v328, 4294901760
      %929 = vmatmul.f32.gmra.mxu0 %v928
      %v930 = vpop.f32.mrf.mxu0
      %v931 = vadd.f32 %v821, %v930
      %v932 = vand.u32 %v331, 4294901760
      %933 = vmatmul.f32.gmra.mxu0 %v932
      %v934 = vpop.f32.mrf.mxu0
      %v935 = vadd.f32 %v827, %v934
      %v936 = vand.u32 %v334, 4294901760
      %937 = vmatmul.f32.gmra.mxu0 %v936
      %v938 = vpop.f32.mrf.mxu0
      %v939 = vadd.f32 %v833, %v938
      %v940 = vand.u32 %v337, 4294901760
      %941 = vmatmul.f32.gmra.mxu0 %v940
      %v942 = vpop.f32.mrf.mxu0
      %v943 = vadd.f32 %v839, %v942
      %v944 = vand.u32 %v340, 4294901760
      %945 = vmatmul.f32.gmra.mxu0 %v944
      %v946 = vpop.f32.mrf.mxu0
      %v947 = vadd.f32 %v845, %v946
      %v948 = vand.u32 %v343, 4294901760
      %949 = vmatmul.f32.gmra.mxu0 %v948
      %v950 = vpop.f32.mrf.mxu0
      %v951 = vadd.f32 %v851, %v950
      %v952 = vand.u32 %v346, 4294901760
      %953 = vmatmul.f32.gmra.mxu0 %v952
      %v954 = vpop.f32.mrf.mxu0
      %v955 = vadd.f32 %v857, %v954
      %v956 = vand.u32 %v349, 4294901760
      %957 = vmatmul.f32.gmra.mxu0 %v956
      %v958 = vpop.f32.mrf.mxu0
      %v959 = vadd.f32 %v863, %v958
      %960 = vdwg.mxu0
      %961 = vmatpush.msra.mxu0 0.0
      %962 = vmatpush.msra.mxu0 0.0
      %963 = vmatpush.msra.mxu0 0.0
      %964 = vmatpush.msra.mxu0 0.0
      %965 = vmatpush.msra.mxu0 0.0
      %966 = vmatpush.msra.mxu0 0.0
      %967 = vmatpush.msra.mxu0 0.0
      %968 = vmatpush.msra.mxu0 0.0
      %969 = vmatpush.msra.mxu0 0.0
      %970 = vmatpush.msra.mxu0 0.0
      %971 = vmatpush.msra.mxu0 0.0
      %972 = vmatpush.msra.mxu0 0.0
      %973 = vmatpush.msra.mxu0 0.0
      %974 = vmatpush.msra.mxu0 0.0
      %975 = vmatpush.msra.mxu0 0.0
      %v976 = vand.u32 %v292, 4294901760
      %977 = vmatpush.msra.mxu0 %v976
      %v978 = vand.u32 %v295, 4294901760
      %979 = vmatmul.f32.gmra.mxu0 %v978
      %v980 = vpop.f32.mrf.mxu0
      %v981 = vadd.f32 %v887, %v980
      %v982 = vand.u32 %v298, 4294901760
      %983 = vmatmul.f32.gmra.mxu0 %v982
      %v984 = vpop.f32.mrf.mxu0
      %v985 = vadd.f32 %v891, %v984
      %v986 = vand.u32 %v301, 4294901760
      %987 = vmatmul.f32.gmra.mxu0 %v986
      %v988 = vpop.f32.mrf.mxu0
      %v989 = vadd.f32 %v895, %v988
      %v990 = vand.u32 %v304, 4294901760
      %991 = vmatmul.f32.gmra.mxu0 %v990
      %v992 = vpop.f32.mrf.mxu0
      %v993 = vadd.f32 %v899, %v992
      %v994 = vand.u32 %v307, 4294901760
      %995 = vmatmul.f32.gmra.mxu0 %v994
      %v996 = vpop.f32.mrf.mxu0
      %v997 = vadd.f32 %v903, %v996
      %v998 = vand.u32 %v310, 4294901760
      %999 = vmatmul.f32.gmra.mxu0 %v998
      %v1000 = vpop.f32.mrf.mxu0
      %v1001 = vadd.f32 %v907, %v1000
      %v1002 = vand.u32 %v313, 4294901760
      %1003 = vmatmul.f32.gmra.mxu0 %v1002
      %v1004 = vpop.f32.mrf.mxu0
      %v1005 = vadd.f32 %v911, %v1004
      %v1006 = vand.u32 %v316, 4294901760
      %1007 = vmatmul.f32.gmra.mxu0 %v1006
      %v1008 = vpop.f32.mrf.mxu0
      %v1009 = vadd.f32 %v915, %v1008
      %v1010 = vand.u32 %v319, 4294901760
      %1011 = vmatmul.f32.gmra.mxu0 %v1010
      %v1012 = vpop.f32.mrf.mxu0
      %v1013 = vadd.f32 %v919, %v1012
      %v1014 = vand.u32 %v322, 4294901760
      %1015 = vmatmul.f32.gmra.mxu0 %v1014
      %v1016 = vpop.f32.mrf.mxu0
      %v1017 = vadd.f32 %v923, %v1016
      %v1018 = vand.u32 %v325, 4294901760
      %1019 = vmatmul.f32.gmra.mxu0 %v1018
      %v1020 = vpop.f32.mrf.mxu0
      %v1021 = vadd.f32 %v927, %v1020
      %v1022 = vand.u32 %v328, 4294901760
      %1023 = vmatmul.f32.gmra.mxu0 %v1022
      %v1024 = vpop.f32.mrf.mxu0
      %v1025 = vadd.f32 %v931, %v1024
      %v1026 = vand.u32 %v331, 4294901760
      %1027 = vmatmul.f32.gmra.mxu0 %v1026
      %v1028 = vpop.f32.mrf.mxu0
      %v1029 = vadd.f32 %v935, %v1028
      %v1030 = vand.u32 %v334, 4294901760
      %1031 = vmatmul.f32.gmra.mxu0 %v1030
      %v1032 = vpop.f32.mrf.mxu0
      %v1033 = vadd.f32 %v939, %v1032
      %v1034 = vand.u32 %v337, 4294901760
      %1035 = vmatmul.f32.gmra.mxu0 %v1034
      %v1036 = vpop.f32.mrf.mxu0
      %v1037 = vadd.f32 %v943, %v1036
      %v1038 = vand.u32 %v340, 4294901760
      %1039 = vmatmul.f32.gmra.mxu0 %v1038
      %v1040 = vpop.f32.mrf.mxu0
      %v1041 = vadd.f32 %v947, %v1040
      %v1042 = vand.u32 %v343, 4294901760
      %1043 = vmatmul.f32.gmra.mxu0 %v1042
      %v1044 = vpop.f32.mrf.mxu0
      %v1045 = vadd.f32 %v951, %v1044
      %v1046 = vand.u32 %v346, 4294901760
      %1047 = vmatmul.f32.gmra.mxu0 %v1046
      %v1048 = vpop.f32.mrf.mxu0
      %v1049 = vadd.f32 %v955, %v1048
      %v1050 = vand.u32 %v349, 4294901760
      %1051 = vmatmul.f32.gmra.mxu0 %v1050
      %v1052 = vpop.f32.mrf.mxu0
      %v1053 = vadd.f32 %v959, %v1052
      %1054 = vdwg.mxu0
      %vm1055 = vcmask 261120
      %v1057 = vsel %vm1055, %v250, 0
      %v1060 = vsel %vm1055, %v251, 0
      %v1063 = vsel %vm1055, %v252, 0
      %v1066 = vsel %vm1055, %v253, 0
      %v1069 = vsel %vm1055, %v254, 0
      %v1072 = vsel %vm1055, %v255, 0
      %v1075 = vsel %vm1055, %v256, 0
      %v1078 = vsel %vm1055, %v257, 0
      %v1081 = vsel %vm1055, %v258, 0
      %v1084 = vsel %vm1055, %v259, 0
      %v1087 = vsel %vm1055, %v260, 0
      %v1090 = vsel %vm1055, %v261, 0
      %v1093 = vsel %vm1055, %v262, 0
      %v1096 = vsel %vm1055, %v263, 0
      %v1099 = vsel %vm1055, %v264, 0
      %v1102 = vsel %vm1055, %v265, 0
      %v1105 = vsel %vm1055, %v266, 0
      %v1108 = vsel %vm1055, %v267, 0
      %v1111 = vsel %vm1055, %v268, 0
      %1113 = vmatpush.msra.mxu0 0.0
      %1114 = vmatpush.msra.mxu0 0.0
      %1115 = vmatpush.msra.mxu0 0.0
      %1116 = vmatpush.msra.mxu0 0.0
      %1117 = vmatpush.msra.mxu0 0.0
      %1118 = vmatpush.msra.mxu0 0.0
      %1119 = vmatpush.msra.mxu0 0.0
      %1120 = vmatpush.msra.mxu0 0.0
      %1121 = vmatpush.msra.mxu0 0.0
      %1122 = vmatpush.msra.mxu0 0.0
      %1123 = vmatpush.msra.mxu0 0.0
      %1124 = vmatpush.msra.mxu0 0.0
      %v1125 = vand.u32 %v272, 4294901760
      %1126 = vmatpush.msra.mxu0 %v1125
      %v1127 = vand.u32 %v271, 4294901760
      %1128 = vmatpush.msra.mxu0 %v1127
      %v1129 = vand.u32 %v270, 4294901760
      %1130 = vmatpush.msra.mxu0 %v1129
      %v1131 = vand.u32 %v269, 4294901760
      %1132 = vmatpush.msra.mxu0 %v1131
      %v1133 = vand.u32 %v1057, 4294901760
      %v1134 = vsub.f32 %v1057, %v1133
      %v1135 = vand.u32 %v1134, 4294901760
      %v1136 = vsub.f32 %v1134, %v1135
      %v1137 = vand.u32 %v1136, 4294901760
      %1138 = vmatmul.f32.gmra.mxu0 %v1137
      %v1139 = vpop.f32.mrf.mxu0
      %v1140 = vadd.f32 %v981, %v1139
      %v1141 = vand.u32 %v1060, 4294901760
      %v1142 = vsub.f32 %v1060, %v1141
      %v1143 = vand.u32 %v1142, 4294901760
      %v1144 = vsub.f32 %v1142, %v1143
      %v1145 = vand.u32 %v1144, 4294901760
      %1146 = vmatmul.f32.gmra.mxu0 %v1145
      %v1147 = vpop.f32.mrf.mxu0
      %v1148 = vadd.f32 %v985, %v1147
      %v1149 = vand.u32 %v1063, 4294901760
      %v1150 = vsub.f32 %v1063, %v1149
      %v1151 = vand.u32 %v1150, 4294901760
      %v1152 = vsub.f32 %v1150, %v1151
      %v1153 = vand.u32 %v1152, 4294901760
      %1154 = vmatmul.f32.gmra.mxu0 %v1153
      %v1155 = vpop.f32.mrf.mxu0
      %v1156 = vadd.f32 %v989, %v1155
      %v1157 = vand.u32 %v1066, 4294901760
      %v1158 = vsub.f32 %v1066, %v1157
      %v1159 = vand.u32 %v1158, 4294901760
      %v1160 = vsub.f32 %v1158, %v1159
      %v1161 = vand.u32 %v1160, 4294901760
      %1162 = vmatmul.f32.gmra.mxu0 %v1161
      %v1163 = vpop.f32.mrf.mxu0
      %v1164 = vadd.f32 %v993, %v1163
      %v1165 = vand.u32 %v1069, 4294901760
      %v1166 = vsub.f32 %v1069, %v1165
      %v1167 = vand.u32 %v1166, 4294901760
      %v1168 = vsub.f32 %v1166, %v1167
      %v1169 = vand.u32 %v1168, 4294901760
      %1170 = vmatmul.f32.gmra.mxu0 %v1169
      %v1171 = vpop.f32.mrf.mxu0
      %v1172 = vadd.f32 %v997, %v1171
      %v1173 = vand.u32 %v1072, 4294901760
      %v1174 = vsub.f32 %v1072, %v1173
      %v1175 = vand.u32 %v1174, 4294901760
      %v1176 = vsub.f32 %v1174, %v1175
      %v1177 = vand.u32 %v1176, 4294901760
      %1178 = vmatmul.f32.gmra.mxu0 %v1177
      %v1179 = vpop.f32.mrf.mxu0
      %v1180 = vadd.f32 %v1001, %v1179
      %v1181 = vand.u32 %v1075, 4294901760
      %v1182 = vsub.f32 %v1075, %v1181
      %v1183 = vand.u32 %v1182, 4294901760
      %v1184 = vsub.f32 %v1182, %v1183
      %v1185 = vand.u32 %v1184, 4294901760
      %1186 = vmatmul.f32.gmra.mxu0 %v1185
      %v1187 = vpop.f32.mrf.mxu0
      %v1188 = vadd.f32 %v1005, %v1187
      %v1189 = vand.u32 %v1078, 4294901760
      %v1190 = vsub.f32 %v1078, %v1189
      %v1191 = vand.u32 %v1190, 4294901760
      %v1192 = vsub.f32 %v1190, %v1191
      %v1193 = vand.u32 %v1192, 4294901760
      %1194 = vmatmul.f32.gmra.mxu0 %v1193
      %v1195 = vpop.f32.mrf.mxu0
      %v1196 = vadd.f32 %v1009, %v1195
      %v1197 = vand.u32 %v1081, 4294901760
      %v1198 = vsub.f32 %v1081, %v1197
      %v1199 = vand.u32 %v1198, 4294901760
      %v1200 = vsub.f32 %v1198, %v1199
      %v1201 = vand.u32 %v1200, 4294901760
      %1202 = vmatmul.f32.gmra.mxu0 %v1201
      %v1203 = vpop.f32.mrf.mxu0
      %v1204 = vadd.f32 %v1013, %v1203
      %v1205 = vand.u32 %v1084, 4294901760
      %v1206 = vsub.f32 %v1084, %v1205
      %v1207 = vand.u32 %v1206, 4294901760
      %v1208 = vsub.f32 %v1206, %v1207
      %v1209 = vand.u32 %v1208, 4294901760
      %1210 = vmatmul.f32.gmra.mxu0 %v1209
      %v1211 = vpop.f32.mrf.mxu0
      %v1212 = vadd.f32 %v1017, %v1211
      %v1213 = vand.u32 %v1087, 4294901760
      %v1214 = vsub.f32 %v1087, %v1213
      %v1215 = vand.u32 %v1214, 4294901760
      %v1216 = vsub.f32 %v1214, %v1215
      %v1217 = vand.u32 %v1216, 4294901760
      %1218 = vmatmul.f32.gmra.mxu0 %v1217
      %v1219 = vpop.f32.mrf.mxu0
      %v1220 = vadd.f32 %v1021, %v1219
      %v1221 = vand.u32 %v1090, 4294901760
      %v1222 = vsub.f32 %v1090, %v1221
      %v1223 = vand.u32 %v1222, 4294901760
      %v1224 = vsub.f32 %v1222, %v1223
      %v1225 = vand.u32 %v1224, 4294901760
      %1226 = vmatmul.f32.gmra.mxu0 %v1225
      %v1227 = vpop.f32.mrf.mxu0
      %v1228 = vadd.f32 %v1025, %v1227
      %v1229 = vand.u32 %v1093, 4294901760
      %v1230 = vsub.f32 %v1093, %v1229
      %v1231 = vand.u32 %v1230, 4294901760
      %v1232 = vsub.f32 %v1230, %v1231
      %v1233 = vand.u32 %v1232, 4294901760
      %1234 = vmatmul.f32.gmra.mxu0 %v1233
      %v1235 = vpop.f32.mrf.mxu0
      %v1236 = vadd.f32 %v1029, %v1235
      %v1237 = vand.u32 %v1096, 4294901760
      %v1238 = vsub.f32 %v1096, %v1237
      %v1239 = vand.u32 %v1238, 4294901760
      %v1240 = vsub.f32 %v1238, %v1239
      %v1241 = vand.u32 %v1240, 4294901760
      %1242 = vmatmul.f32.gmra.mxu0 %v1241
      %v1243 = vpop.f32.mrf.mxu0
      %v1244 = vadd.f32 %v1033, %v1243
      %v1245 = vand.u32 %v1099, 4294901760
      %v1246 = vsub.f32 %v1099, %v1245
      %v1247 = vand.u32 %v1246, 4294901760
      %v1248 = vsub.f32 %v1246, %v1247
      %v1249 = vand.u32 %v1248, 4294901760
      %1250 = vmatmul.f32.gmra.mxu0 %v1249
      %v1251 = vpop.f32.mrf.mxu0
      %v1252 = vadd.f32 %v1037, %v1251
      %v1253 = vand.u32 %v1102, 4294901760
      %v1254 = vsub.f32 %v1102, %v1253
      %v1255 = vand.u32 %v1254, 4294901760
      %v1256 = vsub.f32 %v1254, %v1255
      %v1257 = vand.u32 %v1256, 4294901760
      %1258 = vmatmul.f32.gmra.mxu0 %v1257
      %v1259 = vpop.f32.mrf.mxu0
      %v1260 = vadd.f32 %v1041, %v1259
      %v1261 = vand.u32 %v1105, 4294901760
      %v1262 = vsub.f32 %v1105, %v1261
      %v1263 = vand.u32 %v1262, 4294901760
      %v1264 = vsub.f32 %v1262, %v1263
      %v1265 = vand.u32 %v1264, 4294901760
      %1266 = vmatmul.f32.gmra.mxu0 %v1265
      %v1267 = vpop.f32.mrf.mxu0
      %v1268 = vadd.f32 %v1045, %v1267
      %v1269 = vand.u32 %v1108, 4294901760
      %v1270 = vsub.f32 %v1108, %v1269
      %v1271 = vand.u32 %v1270, 4294901760
      %v1272 = vsub.f32 %v1270, %v1271
      %v1273 = vand.u32 %v1272, 4294901760
      %1274 = vmatmul.f32.gmra.mxu0 %v1273
      %v1275 = vpop.f32.mrf.mxu0
      %v1276 = vadd.f32 %v1049, %v1275
      %v1277 = vand.u32 %v1111, 4294901760
      %v1278 = vsub.f32 %v1111, %v1277
      %v1279 = vand.u32 %v1278, 4294901760
      %v1280 = vsub.f32 %v1278, %v1279
      %v1281 = vand.u32 %v1280, 4294901760
      %1282 = vmatmul.f32.gmra.mxu0 %v1281
      %v1283 = vpop.f32.mrf.mxu0
      %v1284 = vadd.f32 %v1053, %v1283
      %1285 = vdwg.mxu0
      %1286 = vmatpush.msra.mxu0 0.0
      %1287 = vmatpush.msra.mxu0 0.0
      %1288 = vmatpush.msra.mxu0 0.0
      %1289 = vmatpush.msra.mxu0 0.0
      %1290 = vmatpush.msra.mxu0 0.0
      %1291 = vmatpush.msra.mxu0 0.0
      %1292 = vmatpush.msra.mxu0 0.0
      %1293 = vmatpush.msra.mxu0 0.0
      %1294 = vmatpush.msra.mxu0 0.0
      %1295 = vmatpush.msra.mxu0 0.0
      %1296 = vmatpush.msra.mxu0 0.0
      %1297 = vmatpush.msra.mxu0 0.0
      %v1298 = vand.u32 %v272, 4294901760
      %v1299 = vsub.f32 %v272, %v1298
      %v1300 = vand.u32 %v1299, 4294901760
      %v1301 = vsub.f32 %v1299, %v1300
      %v1302 = vand.u32 %v1301, 4294901760
      %1303 = vmatpush.msra.mxu0 %v1302
      %v1304 = vand.u32 %v271, 4294901760
      %v1305 = vsub.f32 %v271, %v1304
      %v1306 = vand.u32 %v1305, 4294901760
      %v1307 = vsub.f32 %v1305, %v1306
      %v1308 = vand.u32 %v1307, 4294901760
      %1309 = vmatpush.msra.mxu0 %v1308
      %v1310 = vand.u32 %v270, 4294901760
      %v1311 = vsub.f32 %v270, %v1310
      %v1312 = vand.u32 %v1311, 4294901760
      %v1313 = vsub.f32 %v1311, %v1312
      %v1314 = vand.u32 %v1313, 4294901760
      %1315 = vmatpush.msra.mxu0 %v1314
      %v1316 = vand.u32 %v269, 4294901760
      %v1317 = vsub.f32 %v269, %v1316
      %v1318 = vand.u32 %v1317, 4294901760
      %v1319 = vsub.f32 %v1317, %v1318
      %v1320 = vand.u32 %v1319, 4294901760
      %1321 = vmatpush.msra.mxu0 %v1320
      %v1322 = vand.u32 %v1057, 4294901760
      %1323 = vmatmul.f32.gmra.mxu0 %v1322
      %v1324 = vpop.f32.mrf.mxu0
      %v1325 = vadd.f32 %v1140, %v1324
      %v1326 = vand.u32 %v1060, 4294901760
      %1327 = vmatmul.f32.gmra.mxu0 %v1326
      %v1328 = vpop.f32.mrf.mxu0
      %v1329 = vadd.f32 %v1148, %v1328
      %v1330 = vand.u32 %v1063, 4294901760
      %1331 = vmatmul.f32.gmra.mxu0 %v1330
      %v1332 = vpop.f32.mrf.mxu0
      %v1333 = vadd.f32 %v1156, %v1332
      %v1334 = vand.u32 %v1066, 4294901760
      %1335 = vmatmul.f32.gmra.mxu0 %v1334
      %v1336 = vpop.f32.mrf.mxu0
      %v1337 = vadd.f32 %v1164, %v1336
      %v1338 = vand.u32 %v1069, 4294901760
      %1339 = vmatmul.f32.gmra.mxu0 %v1338
      %v1340 = vpop.f32.mrf.mxu0
      %v1341 = vadd.f32 %v1172, %v1340
      %v1342 = vand.u32 %v1072, 4294901760
      %1343 = vmatmul.f32.gmra.mxu0 %v1342
      %v1344 = vpop.f32.mrf.mxu0
      %v1345 = vadd.f32 %v1180, %v1344
      %v1346 = vand.u32 %v1075, 4294901760
      %1347 = vmatmul.f32.gmra.mxu0 %v1346
      %v1348 = vpop.f32.mrf.mxu0
      %v1349 = vadd.f32 %v1188, %v1348
      %v1350 = vand.u32 %v1078, 4294901760
      %1351 = vmatmul.f32.gmra.mxu0 %v1350
      %v1352 = vpop.f32.mrf.mxu0
      %v1353 = vadd.f32 %v1196, %v1352
      %v1354 = vand.u32 %v1081, 4294901760
      %1355 = vmatmul.f32.gmra.mxu0 %v1354
      %v1356 = vpop.f32.mrf.mxu0
      %v1357 = vadd.f32 %v1204, %v1356
      %v1358 = vand.u32 %v1084, 4294901760
      %1359 = vmatmul.f32.gmra.mxu0 %v1358
      %v1360 = vpop.f32.mrf.mxu0
      %v1361 = vadd.f32 %v1212, %v1360
      %v1362 = vand.u32 %v1087, 4294901760
      %1363 = vmatmul.f32.gmra.mxu0 %v1362
      %v1364 = vpop.f32.mrf.mxu0
      %v1365 = vadd.f32 %v1220, %v1364
      %v1366 = vand.u32 %v1090, 4294901760
      %1367 = vmatmul.f32.gmra.mxu0 %v1366
      %v1368 = vpop.f32.mrf.mxu0
      %v1369 = vadd.f32 %v1228, %v1368
      %v1370 = vand.u32 %v1093, 4294901760
      %1371 = vmatmul.f32.gmra.mxu0 %v1370
      %v1372 = vpop.f32.mrf.mxu0
      %v1373 = vadd.f32 %v1236, %v1372
      %v1374 = vand.u32 %v1096, 4294901760
      %1375 = vmatmul.f32.gmra.mxu0 %v1374
      %v1376 = vpop.f32.mrf.mxu0
      %v1377 = vadd.f32 %v1244, %v1376
      %v1378 = vand.u32 %v1099, 4294901760
      %1379 = vmatmul.f32.gmra.mxu0 %v1378
      %v1380 = vpop.f32.mrf.mxu0
      %v1381 = vadd.f32 %v1252, %v1380
      %v1382 = vand.u32 %v1102, 4294901760
      %1383 = vmatmul.f32.gmra.mxu0 %v1382
      %v1384 = vpop.f32.mrf.mxu0
      %v1385 = vadd.f32 %v1260, %v1384
      %v1386 = vand.u32 %v1105, 4294901760
      %1387 = vmatmul.f32.gmra.mxu0 %v1386
      %v1388 = vpop.f32.mrf.mxu0
      %v1389 = vadd.f32 %v1268, %v1388
      %v1390 = vand.u32 %v1108, 4294901760
      %1391 = vmatmul.f32.gmra.mxu0 %v1390
      %v1392 = vpop.f32.mrf.mxu0
      %v1393 = vadd.f32 %v1276, %v1392
      %v1394 = vand.u32 %v1111, 4294901760
      %1395 = vmatmul.f32.gmra.mxu0 %v1394
      %v1396 = vpop.f32.mrf.mxu0
      %v1397 = vadd.f32 %v1284, %v1396
      %1398 = vdwg.mxu0
      %1399 = vmatpush.msra.mxu0 0.0
      %1400 = vmatpush.msra.mxu0 0.0
      %1401 = vmatpush.msra.mxu0 0.0
      %1402 = vmatpush.msra.mxu0 0.0
      %1403 = vmatpush.msra.mxu0 0.0
      %1404 = vmatpush.msra.mxu0 0.0
      %1405 = vmatpush.msra.mxu0 0.0
      %1406 = vmatpush.msra.mxu0 0.0
      %1407 = vmatpush.msra.mxu0 0.0
      %1408 = vmatpush.msra.mxu0 0.0
      %1409 = vmatpush.msra.mxu0 0.0
      %1410 = vmatpush.msra.mxu0 0.0
      %v1411 = vand.u32 %v272, 4294901760
      %v1412 = vsub.f32 %v272, %v1411
      %1413 = vmatpush.msra.mxu0 %v1412
      %v1414 = vand.u32 %v271, 4294901760
      %v1415 = vsub.f32 %v271, %v1414
      %1416 = vmatpush.msra.mxu0 %v1415
      %v1417 = vand.u32 %v270, 4294901760
      %v1418 = vsub.f32 %v270, %v1417
      %1419 = vmatpush.msra.mxu0 %v1418
      %v1420 = vand.u32 %v269, 4294901760
      %v1421 = vsub.f32 %v269, %v1420
      %1422 = vmatpush.msra.mxu0 %v1421
      %v1423 = vand.u32 %v1057, 4294901760
      %v1424 = vsub.f32 %v1057, %v1423
      %1425 = vmatmul.f32.gmra.mxu0 %v1424
      %v1426 = vpop.f32.mrf.mxu0
      %v1427 = vadd.f32 %v1325, %v1426
      %v1428 = vand.u32 %v1060, 4294901760
      %v1429 = vsub.f32 %v1060, %v1428
      %1430 = vmatmul.f32.gmra.mxu0 %v1429
      %v1431 = vpop.f32.mrf.mxu0
      %v1432 = vadd.f32 %v1329, %v1431
      %v1433 = vand.u32 %v1063, 4294901760
      %v1434 = vsub.f32 %v1063, %v1433
      %1435 = vmatmul.f32.gmra.mxu0 %v1434
      %v1436 = vpop.f32.mrf.mxu0
      %v1437 = vadd.f32 %v1333, %v1436
      %v1438 = vand.u32 %v1066, 4294901760
      %v1439 = vsub.f32 %v1066, %v1438
      %1440 = vmatmul.f32.gmra.mxu0 %v1439
      %v1441 = vpop.f32.mrf.mxu0
      %v1442 = vadd.f32 %v1337, %v1441
      %v1443 = vand.u32 %v1069, 4294901760
      %v1444 = vsub.f32 %v1069, %v1443
      %1445 = vmatmul.f32.gmra.mxu0 %v1444
      %v1446 = vpop.f32.mrf.mxu0
      %v1447 = vadd.f32 %v1341, %v1446
      %v1448 = vand.u32 %v1072, 4294901760
      %v1449 = vsub.f32 %v1072, %v1448
      %1450 = vmatmul.f32.gmra.mxu0 %v1449
      %v1451 = vpop.f32.mrf.mxu0
      %v1452 = vadd.f32 %v1345, %v1451
      %v1453 = vand.u32 %v1075, 4294901760
      %v1454 = vsub.f32 %v1075, %v1453
      %1455 = vmatmul.f32.gmra.mxu0 %v1454
      %v1456 = vpop.f32.mrf.mxu0
      %v1457 = vadd.f32 %v1349, %v1456
      %v1458 = vand.u32 %v1078, 4294901760
      %v1459 = vsub.f32 %v1078, %v1458
      %1460 = vmatmul.f32.gmra.mxu0 %v1459
      %v1461 = vpop.f32.mrf.mxu0
      %v1462 = vadd.f32 %v1353, %v1461
      %v1463 = vand.u32 %v1081, 4294901760
      %v1464 = vsub.f32 %v1081, %v1463
      %1465 = vmatmul.f32.gmra.mxu0 %v1464
      %v1466 = vpop.f32.mrf.mxu0
      %v1467 = vadd.f32 %v1357, %v1466
      %v1468 = vand.u32 %v1084, 4294901760
      %v1469 = vsub.f32 %v1084, %v1468
      %1470 = vmatmul.f32.gmra.mxu0 %v1469
      %v1471 = vpop.f32.mrf.mxu0
      %v1472 = vadd.f32 %v1361, %v1471
      %v1473 = vand.u32 %v1087, 4294901760
      %v1474 = vsub.f32 %v1087, %v1473
      %1475 = vmatmul.f32.gmra.mxu0 %v1474
      %v1476 = vpop.f32.mrf.mxu0
      %v1477 = vadd.f32 %v1365, %v1476
      %v1478 = vand.u32 %v1090, 4294901760
      %v1479 = vsub.f32 %v1090, %v1478
      %1480 = vmatmul.f32.gmra.mxu0 %v1479
      %v1481 = vpop.f32.mrf.mxu0
      %v1482 = vadd.f32 %v1369, %v1481
      %v1483 = vand.u32 %v1093, 4294901760
      %v1484 = vsub.f32 %v1093, %v1483
      %1485 = vmatmul.f32.gmra.mxu0 %v1484
      %v1486 = vpop.f32.mrf.mxu0
      %v1487 = vadd.f32 %v1373, %v1486
      %v1488 = vand.u32 %v1096, 4294901760
      %v1489 = vsub.f32 %v1096, %v1488
      %1490 = vmatmul.f32.gmra.mxu0 %v1489
      %v1491 = vpop.f32.mrf.mxu0
      %v1492 = vadd.f32 %v1377, %v1491
      %v1493 = vand.u32 %v1099, 4294901760
      %v1494 = vsub.f32 %v1099, %v1493
      %1495 = vmatmul.f32.gmra.mxu0 %v1494
      %v1496 = vpop.f32.mrf.mxu0
      %v1497 = vadd.f32 %v1381, %v1496
      %v1498 = vand.u32 %v1102, 4294901760
      %v1499 = vsub.f32 %v1102, %v1498
      %1500 = vmatmul.f32.gmra.mxu0 %v1499
      %v1501 = vpop.f32.mrf.mxu0
      %v1502 = vadd.f32 %v1385, %v1501
      %v1503 = vand.u32 %v1105, 4294901760
      %v1504 = vsub.f32 %v1105, %v1503
      %1505 = vmatmul.f32.gmra.mxu0 %v1504
      %v1506 = vpop.f32.mrf.mxu0
      %v1507 = vadd.f32 %v1389, %v1506
      %v1508 = vand.u32 %v1108, 4294901760
      %v1509 = vsub.f32 %v1108, %v1508
      %1510 = vmatmul.f32.gmra.mxu0 %v1509
      %v1511 = vpop.f32.mrf.mxu0
      %v1512 = vadd.f32 %v1393, %v1511
      %v1513 = vand.u32 %v1111, 4294901760
      %v1514 = vsub.f32 %v1111, %v1513
      %1515 = vmatmul.f32.gmra.mxu0 %v1514
      %v1516 = vpop.f32.mrf.mxu0
      %v1517 = vadd.f32 %v1397, %v1516
      %1518 = vdwg.mxu0
      %1519 = vmatpush.msra.mxu0 0.0
      %1520 = vmatpush.msra.mxu0 0.0
      %1521 = vmatpush.msra.mxu0 0.0
      %1522 = vmatpush.msra.mxu0 0.0
      %1523 = vmatpush.msra.mxu0 0.0
      %1524 = vmatpush.msra.mxu0 0.0
      %1525 = vmatpush.msra.mxu0 0.0
      %1526 = vmatpush.msra.mxu0 0.0
      %1527 = vmatpush.msra.mxu0 0.0
      %1528 = vmatpush.msra.mxu0 0.0
      %1529 = vmatpush.msra.mxu0 0.0
      %1530 = vmatpush.msra.mxu0 0.0
      %v1531 = vand.u32 %v272, 4294901760
      %1532 = vmatpush.msra.mxu0 %v1531
      %v1533 = vand.u32 %v271, 4294901760
      %1534 = vmatpush.msra.mxu0 %v1533
      %v1535 = vand.u32 %v270, 4294901760
      %1536 = vmatpush.msra.mxu0 %v1535
      %v1537 = vand.u32 %v269, 4294901760
      %1538 = vmatpush.msra.mxu0 %v1537
      %v1539 = vand.u32 %v1057, 4294901760
      %v1540 = vsub.f32 %v1057, %v1539
      %v1541 = vand.u32 %v1540, 4294901760
      %1542 = vmatmul.f32.gmra.mxu0 %v1541
      %v1543 = vpop.f32.mrf.mxu0
      %v1544 = vadd.f32 %v1427, %v1543
      %v1545 = vand.u32 %v1060, 4294901760
      %v1546 = vsub.f32 %v1060, %v1545
      %v1547 = vand.u32 %v1546, 4294901760
      %1548 = vmatmul.f32.gmra.mxu0 %v1547
      %v1549 = vpop.f32.mrf.mxu0
      %v1550 = vadd.f32 %v1432, %v1549
      %v1551 = vand.u32 %v1063, 4294901760
      %v1552 = vsub.f32 %v1063, %v1551
      %v1553 = vand.u32 %v1552, 4294901760
      %1554 = vmatmul.f32.gmra.mxu0 %v1553
      %v1555 = vpop.f32.mrf.mxu0
      %v1556 = vadd.f32 %v1437, %v1555
      %v1557 = vand.u32 %v1066, 4294901760
      %v1558 = vsub.f32 %v1066, %v1557
      %v1559 = vand.u32 %v1558, 4294901760
      %1560 = vmatmul.f32.gmra.mxu0 %v1559
      %v1561 = vpop.f32.mrf.mxu0
      %v1562 = vadd.f32 %v1442, %v1561
      %v1563 = vand.u32 %v1069, 4294901760
      %v1564 = vsub.f32 %v1069, %v1563
      %v1565 = vand.u32 %v1564, 4294901760
      %1566 = vmatmul.f32.gmra.mxu0 %v1565
      %v1567 = vpop.f32.mrf.mxu0
      %v1568 = vadd.f32 %v1447, %v1567
      %v1569 = vand.u32 %v1072, 4294901760
      %v1570 = vsub.f32 %v1072, %v1569
      %v1571 = vand.u32 %v1570, 4294901760
      %1572 = vmatmul.f32.gmra.mxu0 %v1571
      %v1573 = vpop.f32.mrf.mxu0
      %v1574 = vadd.f32 %v1452, %v1573
      %v1575 = vand.u32 %v1075, 4294901760
      %v1576 = vsub.f32 %v1075, %v1575
      %v1577 = vand.u32 %v1576, 4294901760
      %1578 = vmatmul.f32.gmra.mxu0 %v1577
      %v1579 = vpop.f32.mrf.mxu0
      %v1580 = vadd.f32 %v1457, %v1579
      %v1581 = vand.u32 %v1078, 4294901760
      %v1582 = vsub.f32 %v1078, %v1581
      %v1583 = vand.u32 %v1582, 4294901760
      %1584 = vmatmul.f32.gmra.mxu0 %v1583
      %v1585 = vpop.f32.mrf.mxu0
      %v1586 = vadd.f32 %v1462, %v1585
      %v1587 = vand.u32 %v1081, 4294901760
      %v1588 = vsub.f32 %v1081, %v1587
      %v1589 = vand.u32 %v1588, 4294901760
      %1590 = vmatmul.f32.gmra.mxu0 %v1589
      %v1591 = vpop.f32.mrf.mxu0
      %v1592 = vadd.f32 %v1467, %v1591
      %v1593 = vand.u32 %v1084, 4294901760
      %v1594 = vsub.f32 %v1084, %v1593
      %v1595 = vand.u32 %v1594, 4294901760
      %1596 = vmatmul.f32.gmra.mxu0 %v1595
      %v1597 = vpop.f32.mrf.mxu0
      %v1598 = vadd.f32 %v1472, %v1597
      %v1599 = vand.u32 %v1087, 4294901760
      %v1600 = vsub.f32 %v1087, %v1599
      %v1601 = vand.u32 %v1600, 4294901760
      %1602 = vmatmul.f32.gmra.mxu0 %v1601
      %v1603 = vpop.f32.mrf.mxu0
      %v1604 = vadd.f32 %v1477, %v1603
      %v1605 = vand.u32 %v1090, 4294901760
      %v1606 = vsub.f32 %v1090, %v1605
      %v1607 = vand.u32 %v1606, 4294901760
      %1608 = vmatmul.f32.gmra.mxu0 %v1607
      %v1609 = vpop.f32.mrf.mxu0
      %v1610 = vadd.f32 %v1482, %v1609
      %v1611 = vand.u32 %v1093, 4294901760
      %v1612 = vsub.f32 %v1093, %v1611
      %v1613 = vand.u32 %v1612, 4294901760
      %1614 = vmatmul.f32.gmra.mxu0 %v1613
      %v1615 = vpop.f32.mrf.mxu0
      %v1616 = vadd.f32 %v1487, %v1615
      %v1617 = vand.u32 %v1096, 4294901760
      %v1618 = vsub.f32 %v1096, %v1617
      %v1619 = vand.u32 %v1618, 4294901760
      %1620 = vmatmul.f32.gmra.mxu0 %v1619
      %v1621 = vpop.f32.mrf.mxu0
      %v1622 = vadd.f32 %v1492, %v1621
      %v1623 = vand.u32 %v1099, 4294901760
      %v1624 = vsub.f32 %v1099, %v1623
      %v1625 = vand.u32 %v1624, 4294901760
      %1626 = vmatmul.f32.gmra.mxu0 %v1625
      %v1627 = vpop.f32.mrf.mxu0
      %v1628 = vadd.f32 %v1497, %v1627
      %v1629 = vand.u32 %v1102, 4294901760
      %v1630 = vsub.f32 %v1102, %v1629
      %v1631 = vand.u32 %v1630, 4294901760
      %1632 = vmatmul.f32.gmra.mxu0 %v1631
      %v1633 = vpop.f32.mrf.mxu0
      %v1634 = vadd.f32 %v1502, %v1633
      %v1635 = vand.u32 %v1105, 4294901760
      %v1636 = vsub.f32 %v1105, %v1635
      %v1637 = vand.u32 %v1636, 4294901760
      %1638 = vmatmul.f32.gmra.mxu0 %v1637
      %v1639 = vpop.f32.mrf.mxu0
      %v1640 = vadd.f32 %v1507, %v1639
      %v1641 = vand.u32 %v1108, 4294901760
      %v1642 = vsub.f32 %v1108, %v1641
      %v1643 = vand.u32 %v1642, 4294901760
      %1644 = vmatmul.f32.gmra.mxu0 %v1643
      %v1645 = vpop.f32.mrf.mxu0
      %v1646 = vadd.f32 %v1512, %v1645
      %v1647 = vand.u32 %v1111, 4294901760
      %v1648 = vsub.f32 %v1111, %v1647
      %v1649 = vand.u32 %v1648, 4294901760
      %1650 = vmatmul.f32.gmra.mxu0 %v1649
      %v1651 = vpop.f32.mrf.mxu0
      %v1652 = vadd.f32 %v1517, %v1651
      %1653 = vdwg.mxu0
      %1654 = vmatpush.msra.mxu0 0.0
      %1655 = vmatpush.msra.mxu0 0.0
      %1656 = vmatpush.msra.mxu0 0.0
      %1657 = vmatpush.msra.mxu0 0.0
      %1658 = vmatpush.msra.mxu0 0.0
      %1659 = vmatpush.msra.mxu0 0.0
      %1660 = vmatpush.msra.mxu0 0.0
      %1661 = vmatpush.msra.mxu0 0.0
      %1662 = vmatpush.msra.mxu0 0.0
      %1663 = vmatpush.msra.mxu0 0.0
      %1664 = vmatpush.msra.mxu0 0.0
      %1665 = vmatpush.msra.mxu0 0.0
      %v1666 = vand.u32 %v272, 4294901760
      %v1667 = vsub.f32 %v272, %v1666
      %v1668 = vand.u32 %v1667, 4294901760
      %1669 = vmatpush.msra.mxu0 %v1668
      %v1670 = vand.u32 %v271, 4294901760
      %v1671 = vsub.f32 %v271, %v1670
      %v1672 = vand.u32 %v1671, 4294901760
      %1673 = vmatpush.msra.mxu0 %v1672
      %v1674 = vand.u32 %v270, 4294901760
      %v1675 = vsub.f32 %v270, %v1674
      %v1676 = vand.u32 %v1675, 4294901760
      %1677 = vmatpush.msra.mxu0 %v1676
      %v1678 = vand.u32 %v269, 4294901760
      %v1679 = vsub.f32 %v269, %v1678
      %v1680 = vand.u32 %v1679, 4294901760
      %1681 = vmatpush.msra.mxu0 %v1680
      %v1682 = vand.u32 %v1057, 4294901760
      %1683 = vmatmul.f32.gmra.mxu0 %v1682
      %v1684 = vpop.f32.mrf.mxu0
      %v1685 = vadd.f32 %v1544, %v1684
      %v1686 = vand.u32 %v1060, 4294901760
      %1687 = vmatmul.f32.gmra.mxu0 %v1686
      %v1688 = vpop.f32.mrf.mxu0
      %v1689 = vadd.f32 %v1550, %v1688
      %v1690 = vand.u32 %v1063, 4294901760
      %1691 = vmatmul.f32.gmra.mxu0 %v1690
      %v1692 = vpop.f32.mrf.mxu0
      %v1693 = vadd.f32 %v1556, %v1692
      %v1694 = vand.u32 %v1066, 4294901760
      %1695 = vmatmul.f32.gmra.mxu0 %v1694
      %v1696 = vpop.f32.mrf.mxu0
      %v1697 = vadd.f32 %v1562, %v1696
      %v1698 = vand.u32 %v1069, 4294901760
      %1699 = vmatmul.f32.gmra.mxu0 %v1698
      %v1700 = vpop.f32.mrf.mxu0
      %v1701 = vadd.f32 %v1568, %v1700
      %v1702 = vand.u32 %v1072, 4294901760
      %1703 = vmatmul.f32.gmra.mxu0 %v1702
      %v1704 = vpop.f32.mrf.mxu0
      %v1705 = vadd.f32 %v1574, %v1704
      %v1706 = vand.u32 %v1075, 4294901760
      %1707 = vmatmul.f32.gmra.mxu0 %v1706
      %v1708 = vpop.f32.mrf.mxu0
      %v1709 = vadd.f32 %v1580, %v1708
      %v1710 = vand.u32 %v1078, 4294901760
      %1711 = vmatmul.f32.gmra.mxu0 %v1710
      %v1712 = vpop.f32.mrf.mxu0
      %v1713 = vadd.f32 %v1586, %v1712
      %v1714 = vand.u32 %v1081, 4294901760
      %1715 = vmatmul.f32.gmra.mxu0 %v1714
      %v1716 = vpop.f32.mrf.mxu0
      %v1717 = vadd.f32 %v1592, %v1716
      %v1718 = vand.u32 %v1084, 4294901760
      %1719 = vmatmul.f32.gmra.mxu0 %v1718
      %v1720 = vpop.f32.mrf.mxu0
      %v1721 = vadd.f32 %v1598, %v1720
      %v1722 = vand.u32 %v1087, 4294901760
      %1723 = vmatmul.f32.gmra.mxu0 %v1722
      %v1724 = vpop.f32.mrf.mxu0
      %v1725 = vadd.f32 %v1604, %v1724
      %v1726 = vand.u32 %v1090, 4294901760
      %1727 = vmatmul.f32.gmra.mxu0 %v1726
      %v1728 = vpop.f32.mrf.mxu0
      %v1729 = vadd.f32 %v1610, %v1728
      %v1730 = vand.u32 %v1093, 4294901760
      %1731 = vmatmul.f32.gmra.mxu0 %v1730
      %v1732 = vpop.f32.mrf.mxu0
      %v1733 = vadd.f32 %v1616, %v1732
      %v1734 = vand.u32 %v1096, 4294901760
      %1735 = vmatmul.f32.gmra.mxu0 %v1734
      %v1736 = vpop.f32.mrf.mxu0
      %v1737 = vadd.f32 %v1622, %v1736
      %v1738 = vand.u32 %v1099, 4294901760
      %1739 = vmatmul.f32.gmra.mxu0 %v1738
      %v1740 = vpop.f32.mrf.mxu0
      %v1741 = vadd.f32 %v1628, %v1740
      %v1742 = vand.u32 %v1102, 4294901760
      %1743 = vmatmul.f32.gmra.mxu0 %v1742
      %v1744 = vpop.f32.mrf.mxu0
      %v1745 = vadd.f32 %v1634, %v1744
      %v1746 = vand.u32 %v1105, 4294901760
      %1747 = vmatmul.f32.gmra.mxu0 %v1746
      %v1748 = vpop.f32.mrf.mxu0
      %v1749 = vadd.f32 %v1640, %v1748
      %v1750 = vand.u32 %v1108, 4294901760
      %1751 = vmatmul.f32.gmra.mxu0 %v1750
      %v1752 = vpop.f32.mrf.mxu0
      %v1753 = vadd.f32 %v1646, %v1752
      %v1754 = vand.u32 %v1111, 4294901760
      %1755 = vmatmul.f32.gmra.mxu0 %v1754
      %v1756 = vpop.f32.mrf.mxu0
      %v1757 = vadd.f32 %v1652, %v1756
      %1758 = vdwg.mxu0
      %1759 = vmatpush.msra.mxu0 0.0
      %1760 = vmatpush.msra.mxu0 0.0
      %1761 = vmatpush.msra.mxu0 0.0
      %1762 = vmatpush.msra.mxu0 0.0
      %1763 = vmatpush.msra.mxu0 0.0
      %1764 = vmatpush.msra.mxu0 0.0
      %1765 = vmatpush.msra.mxu0 0.0
      %1766 = vmatpush.msra.mxu0 0.0
      %1767 = vmatpush.msra.mxu0 0.0
      %1768 = vmatpush.msra.mxu0 0.0
      %1769 = vmatpush.msra.mxu0 0.0
      %1770 = vmatpush.msra.mxu0 0.0
      %v1771 = vand.u32 %v272, 4294901760
      %1772 = vmatpush.msra.mxu0 %v1771
      %v1773 = vand.u32 %v271, 4294901760
      %1774 = vmatpush.msra.mxu0 %v1773
      %v1775 = vand.u32 %v270, 4294901760
      %1776 = vmatpush.msra.mxu0 %v1775
      %v1777 = vand.u32 %v269, 4294901760
      %1778 = vmatpush.msra.mxu0 %v1777
      %v1779 = vand.u32 %v1057, 4294901760
      %1780 = vmatmul.f32.gmra.mxu0 %v1779
      %v1781 = vpop.f32.mrf.mxu0
      %v1782 = vadd.f32 %v1685, %v1781
      %v1783 = vand.u32 %v1060, 4294901760
      %1784 = vmatmul.f32.gmra.mxu0 %v1783
      %v1785 = vpop.f32.mrf.mxu0
      %v1786 = vadd.f32 %v1689, %v1785
      %v1787 = vand.u32 %v1063, 4294901760
      %1788 = vmatmul.f32.gmra.mxu0 %v1787
      %v1789 = vpop.f32.mrf.mxu0
      %v1790 = vadd.f32 %v1693, %v1789
      %v1791 = vand.u32 %v1066, 4294901760
      %1792 = vmatmul.f32.gmra.mxu0 %v1791
      %v1793 = vpop.f32.mrf.mxu0
      %v1794 = vadd.f32 %v1697, %v1793
      %v1795 = vand.u32 %v1069, 4294901760
      %1796 = vmatmul.f32.gmra.mxu0 %v1795
      %v1797 = vpop.f32.mrf.mxu0
      %v1798 = vadd.f32 %v1701, %v1797
      %v1799 = vand.u32 %v1072, 4294901760
      %1800 = vmatmul.f32.gmra.mxu0 %v1799
      %v1801 = vpop.f32.mrf.mxu0
      %v1802 = vadd.f32 %v1705, %v1801
      %v1803 = vand.u32 %v1075, 4294901760
      %1804 = vmatmul.f32.gmra.mxu0 %v1803
      %v1805 = vpop.f32.mrf.mxu0
      %v1806 = vadd.f32 %v1709, %v1805
      %v1807 = vand.u32 %v1078, 4294901760
      %1808 = vmatmul.f32.gmra.mxu0 %v1807
      %v1809 = vpop.f32.mrf.mxu0
      %v1810 = vadd.f32 %v1713, %v1809
      %v1811 = vand.u32 %v1081, 4294901760
      %1812 = vmatmul.f32.gmra.mxu0 %v1811
      %v1813 = vpop.f32.mrf.mxu0
      %v1814 = vadd.f32 %v1717, %v1813
      %v1815 = vand.u32 %v1084, 4294901760
      %1816 = vmatmul.f32.gmra.mxu0 %v1815
      %v1817 = vpop.f32.mrf.mxu0
      %v1818 = vadd.f32 %v1721, %v1817
      %v1819 = vand.u32 %v1087, 4294901760
      %1820 = vmatmul.f32.gmra.mxu0 %v1819
      %v1821 = vpop.f32.mrf.mxu0
      %v1822 = vadd.f32 %v1725, %v1821
      %v1823 = vand.u32 %v1090, 4294901760
      %1824 = vmatmul.f32.gmra.mxu0 %v1823
      %v1825 = vpop.f32.mrf.mxu0
      %v1826 = vadd.f32 %v1729, %v1825
      %v1827 = vand.u32 %v1093, 4294901760
      %1828 = vmatmul.f32.gmra.mxu0 %v1827
      %v1829 = vpop.f32.mrf.mxu0
      %v1830 = vadd.f32 %v1733, %v1829
      %v1831 = vand.u32 %v1096, 4294901760
      %1832 = vmatmul.f32.gmra.mxu0 %v1831
      %v1833 = vpop.f32.mrf.mxu0
      %v1834 = vadd.f32 %v1737, %v1833
      %v1835 = vand.u32 %v1099, 4294901760
      %1836 = vmatmul.f32.gmra.mxu0 %v1835
      %v1837 = vpop.f32.mrf.mxu0
      %v1838 = vadd.f32 %v1741, %v1837
      %v1839 = vand.u32 %v1102, 4294901760
      %1840 = vmatmul.f32.gmra.mxu0 %v1839
      %v1841 = vpop.f32.mrf.mxu0
      %v1842 = vadd.f32 %v1745, %v1841
      %v1843 = vand.u32 %v1105, 4294901760
      %1844 = vmatmul.f32.gmra.mxu0 %v1843
      %v1845 = vpop.f32.mrf.mxu0
      %v1846 = vadd.f32 %v1749, %v1845
      %v1847 = vand.u32 %v1108, 4294901760
      %1848 = vmatmul.f32.gmra.mxu0 %v1847
      %v1849 = vpop.f32.mrf.mxu0
      %v1850 = vadd.f32 %v1753, %v1849
      %v1851 = vand.u32 %v1111, 4294901760
      %1852 = vmatmul.f32.gmra.mxu0 %v1851
      %v1853 = vpop.f32.mrf.mxu0
      %v1854 = vadd.f32 %v1757, %v1853
      %1855 = vdwg.mxu0
      %v1856 = vld [vmem:[%s4] sm:$0x1]
      %v1858 = vperm.slane %v1856, 0
      %v1860 = vadd.f32 %v1782, %v1858
      %v1861 = vadd.f32 %v1786, %v1858
      %v1862 = vadd.f32 %v1790, %v1858
      %v1863 = vadd.f32 %v1794, %v1858
      %v1864 = vadd.f32 %v1798, %v1858
      %v1865 = vadd.f32 %v1802, %v1858
      %v1866 = vadd.f32 %v1806, %v1858
      %v1867 = vadd.f32 %v1810, %v1858
      %v1868 = vadd.f32 %v1814, %v1858
      %v1869 = vadd.f32 %v1818, %v1858
      %v1870 = vadd.f32 %v1822, %v1858
      %v1871 = vadd.f32 %v1826, %v1858
      %v1872 = vadd.f32 %v1830, %v1858
      %v1873 = vadd.f32 %v1834, %v1858
      %v1874 = vadd.f32 %v1838, %v1858
      %v1875 = vadd.f32 %v1842, %v1858
      %v1876 = vadd.f32 %v1846, %v1858
      %v1877 = vadd.f32 %v1850, %v1858
      %v1878 = vadd.f32 %v1854, %v1858
      %1879 = vst.msk [vmem:[%s248] sm:$0xff] %vm1055, %v1860
      %1880 = vst.msk [vmem:[%s248 + $0x8] sm:$0xff] %vm1055, %v1861
      %1881 = vst.msk [vmem:[%s248 + $0x10] sm:$0xff] %vm1055, %v1862
      %1882 = vst.msk [vmem:[%s248 + $0x18] sm:$0xff] %vm1055, %v1863
      %1883 = vst.msk [vmem:[%s248 + $0x20] sm:$0xff] %vm1055, %v1864
      %1884 = vst.msk [vmem:[%s248 + $0x28] sm:$0xff] %vm1055, %v1865
      %1885 = vst.msk [vmem:[%s248 + $0x30] sm:$0xff] %vm1055, %v1866
      %1886 = vst.msk [vmem:[%s248 + $0x38] sm:$0xff] %vm1055, %v1867
      %1887 = vst.msk [vmem:[%s248 + $0x40] sm:$0xff] %vm1055, %v1868
      %1888 = vst.msk [vmem:[%s248 + $0x48] sm:$0xff] %vm1055, %v1869
      %1889 = vst.msk [vmem:[%s248 + $0x50] sm:$0xff] %vm1055, %v1870
      %1890 = vst.msk [vmem:[%s248 + $0x58] sm:$0xff] %vm1055, %v1871
      %1891 = vst.msk [vmem:[%s248 + $0x60] sm:$0xff] %vm1055, %v1872
      %1892 = vst.msk [vmem:[%s248 + $0x68] sm:$0xff] %vm1055, %v1873
      %1893 = vst.msk [vmem:[%s248 + $0x70] sm:$0xff] %vm1055, %v1874
      %1894 = vst.msk [vmem:[%s248 + $0x78] sm:$0xff] %vm1055, %v1875
      %1895 = vst.msk [vmem:[%s248 + $0x80] sm:$0xff] %vm1055, %v1876
      %1896 = vst.msk [vmem:[%s248 + $0x88] sm:$0xff] %vm1055, %v1877
      %1897 = vst.msk [vmem:[%s248 + $0x90] sm:$0xff] %vm1055, %v1878
      %s1898 = smul.u32 19, %s16
      %p1899 = scmp.lt.s32.totalorder %s1898, 37
      %s1900 = scalar_select %p1899, %s1898, 37
      %s1901 = smul.addr %s1900, 8
      %s1902 = scalar_lea.vmem %s5, %s1901
      // Predicated region
      $region41: #{tpu_custom_call.1} parent=39 // pred_check
        %p1903 = pneg %p149
      $region42: #{tpu_custom_call.1} parent=39 // pred_check_branch
        %1905 = sbr.rel (%p1903) target = $region44
      $region43: #{tpu_custom_call.1} parent=39 // pred_region
        %s1906 = smul.u32 19, %s16
      $region44: #{tpu_custom_call.1} parent=39 // pred_fallthru
        _
    $region40: #{tpu_custom_call.1} parent=5 // pred_fallthru
      _
    %p1907 = scmp.le.s32.totalorder 2, %s11
    // Predicated region
    $region45: #{tpu_custom_call.1} parent=5 // pred_check
      %p1908 = pneg %p1907
    $region46: #{tpu_custom_call.1} parent=5 // pred_check_branch
      %1910 = sbr.rel (%p1908) target = $region48
    $region47: #{tpu_custom_call.1} parent=5 // pred_region
      %s1911 = ssub.s32 %s11, 2
      // Predicated region
      $region49: #{tpu_custom_call.1} parent=47 // pred_check
        %p1912 = pneg %p155
      $region50: #{tpu_custom_call.1} parent=47 // pred_check_branch
        %1914 = sbr.rel (%p1912) target = $region52
      $region51: #{tpu_custom_call.1} parent=47 // pred_region
        %s1915 = smul.u32 19, %s17
        %p1916 = scmp.lt.s32.totalorder %s1915, 37
        %s1917 = scalar_select %p1916, %s1915, 37
        %s1918 = smul.addr %s1917, 8
        %s1919 = scalar_lea.vmem %s5, %s1918
      $region52: #{tpu_custom_call.1} parent=47 // pred_fallthru
        _
    $region48: #{tpu_custom_call.1} parent=5 // pred_fallthru
      _
  $region6: #{tpu_custom_call.1} parent=0 // loop_footer
    %s15 = sadd.s32 1, %s11
  $region7: #{tpu_custom_call.1} parent=0 // loop_footer_branch
    %10 = sbr.rel target = $region3
  $region8: #{tpu_custom_call.1} parent=0 // loop_exit
    _

</llo_original>
